<compile_context>
chip_gen: v6e
topology: v6e:2x2x1
jax: 0.10.0
libtpu: 0.0.40
codegen_flags: <defaults>
</compile_context>

<pallas_src>
import functools

import jax
import jax.numpy as jnp
from jax import lax
from jax.experimental import pallas as pl
from jax.experimental.pallas import tpu as pltpu

BN_EPS = 1e-5  # PyTorch BatchNorm2d default eps


def _concat_nonlocal_kernel(xq_ref, xf_ref, th_w_ref, th_b_ref, kv_w_ref, kv_b_ref,
                            w_w_ref, w_b_ref, o_ref, *, Ci):
    """One (batch element, query tile) step of ConcatBlock(NonLocalBlock2D).

    xq_ref: (1, C, NQ)  query columns of x          (this step's lane slice)
    xf_ref: (1, C, N)   all positions of x (keys)   (constant across the q axis)
    o_ref:  (1, 2C, NQ) [x ; sub(x)] for this lane slice
    """
    C = xq_ref.shape[1]

    # ---- Identity half of the concat: store immediately (shortens x's live range
    #      and lets the output writeback start as early as possible).
    o_ref[0, :C, :] = xq_ref[0].astype(o_ref.dtype)

    xq = xq_ref[0].astype(jnp.float32)                                  # (C, NQ)
    xf = xf_ref[0].astype(jnp.float32)                                  # (C, N)

    # ---- Fused phi/g/ones 1x1 convs over all key positions: one MXU matmul.
    #      Rows [0,Ci): phi, [Ci,2Ci): g, [2Ci,2Ci+8): constant 1.0 rows that carry
    #      the softmax row sum through the y matmul (denominator fused in).
    kv = jnp.dot(kv_w_ref[...], xf,
                 preferred_element_type=jnp.float32) + kv_b_ref[...]   # (2Ci+8, N)
    phi = kv[:Ci, :]                                                    # (Ci, N)
    g_aug = kv[Ci:, :]                                                  # (Ci+8, N)

    # ---- theta over this query tile only.
    theta = jnp.dot(th_w_ref[...], xq,
                    preferred_element_type=jnp.float32) + th_b_ref[...]  # (Ci, NQ)

    # f[i, j] = sum_c theta[c, i] * phi[c, j]   (contract the sublane/channel axis)
    f = lax.dot_general(theta, phi,
                        dimension_numbers=(((0,), (0,)), ((), ())),
                        preferred_element_type=jnp.float32)             # (NQ, N)

    # Numerically stable softmax numerator; normalization deferred.
    p = jnp.exp(f - jnp.max(f, axis=-1, keepdims=True))                 # (NQ, N)

    # y_aug[c, i] = sum_j g_aug[c, j] * p[i, j]:
    #   rows [0,Ci) = unnormalized attention output, row Ci = softmax row sums
    #   (the fused ones-row), already laid out on lanes.
    y_aug = lax.dot_general(g_aug, p,
                            dimension_numbers=(((1,), (1,)), ((), ())),
                            preferred_element_type=jnp.float32)         # (Ci+8, NQ)
    denom = y_aug[Ci:Ci + 1, :]                                         # (1, NQ)
    # Exact reciprocal to stay inside the 1e-4 check; approx=True (EUP slot) is a
    # free win once re-verified against tolerance.
    y = y_aug[:Ci, :] * pl.reciprocal(denom)                            # (Ci, NQ)

    # W 1x1 conv with eval-mode BN folded in, plus residual -> sub(x) half.
    z = jnp.dot(w_w_ref[...], y,
                preferred_element_type=jnp.float32) + w_b_ref[...] + xq  # (C, NQ)
    o_ref[0, C:, :] = z.astype(o_ref.dtype)


def concat_nonlocal_block(x_nchw, params, *, q_tile=128):
    """ConcatBlock(NonLocalBlock2D) forward.  x_nchw: (B, C, H, W) -> (B, 2C, H, W)."""
    B, C, H, W = x_nchw.shape
    Ci = params["theta_w"].shape[0]
    N = H * W
    NQ = min(q_tile, N)
    assert N % NQ == 0, (N, NQ)
    n_qb = N // NQ

    # Channel-major flatten: pure reshape, no transpose / HBM relayout.
    x_flat = x_nchw.reshape(B, C, N)

    # phi/g fused with 8 constant-ones rows (zero weight, bias 1.0, sublane-aligned)
    # so the y matmul also produces the softmax row sums (fused denominator).
    n_ones = 8
    kv_w = jnp.concatenate(
        [params["phi_w"], params["g_w"],
         jnp.zeros((n_ones, C), params["g_w"].dtype)], axis=0)           # (2Ci+8, C)
    kv_b = jnp.concatenate(
        [params["phi_b"], params["g_b"],
         jnp.ones((n_ones, 1), params["g_b"].dtype)], axis=0)            # (2Ci+8, 1)

    # Fold eval-mode BN into the W conv:  bn(Wy+b) = (scale*W) y + ((b-mean)*scale+beta).
    scale = params["bn_gamma"] * lax.rsqrt(params["bn_var"] + BN_EPS)    # (C, 1)
    w_eff = params["W_w"] * scale                                        # (C, Ci)
    b_eff = (params["W_b"] - params["bn_mean"]) * scale + params["bn_beta"]  # (C, 1)

    full = lambda shape: pl.BlockSpec(shape, lambda b, q: (0,) * len(shape))
    kernel = functools.partial(_concat_nonlocal_kernel, Ci=Ci)

    out_flat = pl.pallas_call(
        kernel,
        out_shape=jax.ShapeDtypeStruct((B, 2 * C, N), x_flat.dtype),
        grid_spec=pltpu.PrefetchScalarGridSpec(
            num_scalar_prefetch=0,
            # Both axes parallel: batch and query tiles (>= 2 parallel units of work
            # for v7x's two TensorCores even when B == 1). For very large B, batch
            # elements could additionally be blocked per step to amortize the
            # ~0.35 us/step pipeline overhead.
            grid=(B, n_qb),
            in_specs=[
                pl.BlockSpec((1, C, NQ), lambda b, q: (b, 0, q)),  # query columns of x
                pl.BlockSpec((1, C, N),  lambda b, q: (b, 0, 0)),  # all positions (keys);
                                                                    # re-DMA'd only when b changes
                full((Ci, C)), full((Ci, 1)),                       # theta 1x1 conv
                full((2 * Ci + n_ones, C)), full((2 * Ci + n_ones, 1)),  # fused phi/g/ones
                full((C, Ci)), full((C, 1)),                        # W conv with folded BN
            ],
            out_specs=pl.BlockSpec((1, 2 * C, NQ), lambda b, q: (b, 0, q)),
        ),
        compiler_params=pltpu.CompilerParams(
            dimension_semantics=("parallel", "parallel")),
    )(x_flat, x_flat, params["theta_w"], params["theta_b"], kv_w, kv_b, w_eff, b_eff)

    return out_flat.reshape(B, 2 * C, H, W)


def concat_nonlocal_block_ref(x_nchw, params):
    """Pure-JAX reference mirroring the PyTorch forward (eval-mode BN)."""
    B, C, H, W = x_nchw.shape
    N = H * W
    x = x_nchw.reshape(B, C, N).astype(jnp.float32)
    theta = jnp.einsum("oc,bcn->bon", params["theta_w"], x) + params["theta_b"]
    phi = jnp.einsum("oc,bcn->bon", params["phi_w"], x) + params["phi_b"]
    g = jnp.einsum("oc,bcn->bon", params["g_w"], x) + params["g_b"]
    f = jnp.einsum("bci,bcj->bij", theta, phi)
    f = jax.nn.softmax(f, axis=-1)
    y = jnp.einsum("bij,bcj->bci", f, g)
    wy = jnp.einsum("oc,bcn->bon", params["W_w"], y) + params["W_b"]
    bn = (wy - params["bn_mean"]) * lax.rsqrt(params["bn_var"] + BN_EPS) \
         * params["bn_gamma"] + params["bn_beta"]
    z = bn + x
    out = jnp.concatenate([x, z], axis=1).astype(x_nchw.dtype)
    return out.reshape(B, 2 * C, H, W)


def make_params(key, nc, inter_nc, dtype=jnp.float32):
    """Channel-major params: 1x1 conv weights (out, in) == PyTorch (out,in,1,1) squeezed."""
    ks = jax.random.split(key, 10)
    scale_in = 1.0 / jnp.sqrt(nc)
    scale_int = 1.0 / jnp.sqrt(inter_nc)
    return {
        "theta_w": jax.random.normal(ks[0], (inter_nc, nc), dtype) * scale_in,
        "theta_b": jax.random.normal(ks[1], (inter_nc, 1), dtype) * 0.1,
        "phi_w":   jax.random.normal(ks[2], (inter_nc, nc), dtype) * scale_in,
        "phi_b":   jax.random.normal(ks[3], (inter_nc, 1), dtype) * 0.1,
        "g_w":     jax.random.normal(ks[4], (inter_nc, nc), dtype) * scale_in,
        "g_b":     jax.random.normal(ks[5], (inter_nc, 1), dtype) * 0.1,
        "W_w":     jax.random.normal(ks[6], (nc, inter_nc), dtype) * scale_int,
        "W_b":     jax.random.normal(ks[7], (nc, 1), dtype) * 0.1,
        # BatchNorm2d(nc) parameters / running stats (eval mode).
        "bn_gamma": jnp.ones((nc, 1), dtype) + 0.05 * jax.random.normal(ks[8], (nc, 1), dtype),
        "bn_beta":  0.05 * jax.random.normal(ks[9], (nc, 1), dtype),
        "bn_mean":  jnp.zeros((nc, 1), dtype),
        "bn_var":   jnp.ones((nc, 1), dtype),
    }


if __name__ == "__main__":
    nc, H, W, B = 64, 16, 16, 2
    inter_nc = nc // 2

    key = jax.random.PRNGKey(0)
    kx, kp = jax.random.split(key)
    x = jax.random.normal(kx, (B, nc, H, W), jnp.float32)     # NCHW, like PyTorch
    params = make_params(kp, nc, inter_nc)

    out = concat_nonlocal_block(x, params)
    out = jax.block_until_ready(out)

    ref = concat_nonlocal_block_ref(x, params)
    assert out.shape == (B, 2 * nc, H, W), out.shape
    assert jnp.allclose(out, ref, atol=1e-4, rtol=1e-4), \
        f"max abs err {jnp.max(jnp.abs(out - ref))}"

    print("KERNEL_OK")
</pallas_src>

<mosaic_0001>
module attributes {stable_mosaic.version = 11 : i64} {
  func.func @_concat_nonlocal_kernel(%arg0: i32, %arg1: i32, %arg2: memref<1x64x128xf32, #tpu.memory_space<vmem>>, %arg3: memref<1x64x256xf32, #tpu.memory_space<vmem>>, %arg4: memref<32x64xf32, #tpu.memory_space<vmem>>, %arg5: memref<32x1xf32, #tpu.memory_space<vmem>>, %arg6: memref<72x64xf32, #tpu.memory_space<vmem>>, %arg7: memref<72x1xf32, #tpu.memory_space<vmem>>, %arg8: memref<64x32xf32, #tpu.memory_space<vmem>>, %arg9: memref<64x1xf32, #tpu.memory_space<vmem>>, %arg10: memref<1x128x128xf32, #tpu.memory_space<vmem>>) attributes {dimension_semantics = [#tpu.dimension_semantics<parallel>, #tpu.dimension_semantics<parallel>], iteration_bounds = array<i64: 2, 2>, scalar_prefetch = 0 : i64, scratch_operands = 0 : i64, tpu.core_type = #tpu.core_type<tc>, window_params = [{transform_indices = @transform_0, window_bounds = array<i64: 1, 64, 128>}, {transform_indices = @transform_1, window_bounds = array<i64: 1, 64, 256>}, {pipeline_mode = #tpu.pipeline_mode<synchronous>, transform_indices = @transform_2, window_bounds = array<i64: 32, 64>}, {pipeline_mode = #tpu.pipeline_mode<synchronous>, transform_indices = @transform_3, window_bounds = array<i64: 32, 1>}, {pipeline_mode = #tpu.pipeline_mode<synchronous>, transform_indices = @transform_4, window_bounds = array<i64: 72, 64>}, {pipeline_mode = #tpu.pipeline_mode<synchronous>, transform_indices = @transform_5, window_bounds = array<i64: 72, 1>}, {pipeline_mode = #tpu.pipeline_mode<synchronous>, transform_indices = @transform_6, window_bounds = array<i64: 64, 32>}, {pipeline_mode = #tpu.pipeline_mode<synchronous>, transform_indices = @transform_7, window_bounds = array<i64: 64, 1>}, {transform_indices = @transform_8, window_bounds = array<i64: 1, 128, 128>}]} {
    %c0 = arith.constant 0 : index
    %c0_0 = arith.constant 0 : index
    %c0_1 = arith.constant 0 : index
    %0 = vector.load %arg2[%c0, %c0_0, %c0_1] : memref<1x64x128xf32, #tpu.memory_space<vmem>>, vector<1x64x128xf32>
    %1 = vector.shape_cast %0 : vector<1x64x128xf32> to vector<64x128xf32>
    %c0_2 = arith.constant 0 : index
    %c0_3 = arith.constant 0 : index
    %c0_4 = arith.constant 0 : index
    %2 = vector.load %arg10[%c0_2, %c0_3, %c0_4] : memref<1x128x128xf32, #tpu.memory_space<vmem>>, vector<1x64x128xf32>
    %3 = vector.shape_cast %2 : vector<1x64x128xf32> to vector<64x128xf32>
    %4 = vector.shape_cast %1 : vector<64x128xf32> to vector<1x64x128xf32>
    tpu.vector_store %arg10[%c0_2, %c0_3, %c0_4], %4 {strides = array<i32>} : memref<1x128x128xf32, #tpu.memory_space<vmem>>, vector<1x64x128xf32>,
    %c0_5 = arith.constant 0 : index
    %c0_6 = arith.constant 0 : index
    %c0_7 = arith.constant 0 : index
    %5 = vector.load %arg2[%c0_5, %c0_6, %c0_7] : memref<1x64x128xf32, #tpu.memory_space<vmem>>, vector<1x64x128xf32>
    %6 = vector.shape_cast %5 : vector<1x64x128xf32> to vector<64x128xf32>
    %c0_8 = arith.constant 0 : index
    %c0_9 = arith.constant 0 : index
    %c0_10 = arith.constant 0 : index
    %7 = vector.load %arg3[%c0_8, %c0_9, %c0_10] : memref<1x64x256xf32, #tpu.memory_space<vmem>>, vector<1x64x256xf32>
    %8 = vector.shape_cast %7 : vector<1x64x256xf32> to vector<64x256xf32>
    %c0_11 = arith.constant 0 : index
    %c0_12 = arith.constant 0 : index
    %9 = vector.load %arg6[%c0_11, %c0_12] : memref<72x64xf32, #tpu.memory_space<vmem>>, vector<72x64xf32>
    %cst = arith.constant dense<0.000000e+00> : vector<72x256xf32>
    %10 = tpu.matmul %9, %8, %cst {dimension_numbers = #tpu.dot_dimension_numbers<[1], [0], [0], [1], [0, 0, 1, 1], [], []>} : vector<72x64xf32>, vector<64x256xf32>, vector<72x256xf32> -> vector<72x256xf32>
    %c0_13 = arith.constant 0 : index
    %c0_14 = arith.constant 0 : index
    %11 = vector.load %arg7[%c0_13, %c0_14] : memref<72x1xf32, #tpu.memory_space<vmem>>, vector<72x1xf32>
    %12 = vector.broadcast %11 : vector<72x1xf32> to vector<72x256xf32>
    %13 = arith.addf %10, %12 : vector<72x256xf32>
    %14 = vector.extract_strided_slice %13 {offsets = [0, 0], sizes = [32, 256], strides = [1, 1]} : vector<72x256xf32> to vector<32x256xf32>
    %15 = vector.extract_strided_slice %13 {offsets = [32, 0], sizes = [40, 256], strides = [1, 1]} : vector<72x256xf32> to vector<40x256xf32>
    %c0_15 = arith.constant 0 : index
    %c0_16 = arith.constant 0 : index
    %16 = vector.load %arg4[%c0_15, %c0_16] : memref<32x64xf32, #tpu.memory_space<vmem>>, vector<32x64xf32>
    %cst_17 = arith.constant dense<0.000000e+00> : vector<32x128xf32>
    %17 = tpu.matmul %16, %6, %cst_17 {dimension_numbers = #tpu.dot_dimension_numbers<[1], [0], [0], [1], [0, 0, 1, 1], [], []>} : vector<32x64xf32>, vector<64x128xf32>, vector<32x128xf32> -> vector<32x128xf32>
    %c0_18 = arith.constant 0 : index
    %c0_19 = arith.constant 0 : index
    %18 = vector.load %arg5[%c0_18, %c0_19] : memref<32x1xf32, #tpu.memory_space<vmem>>, vector<32x1xf32>
    %19 = vector.broadcast %18 : vector<32x1xf32> to vector<32x128xf32>
    %20 = arith.addf %17, %19 : vector<32x128xf32>
    %cst_20 = arith.constant dense<0.000000e+00> : vector<128x256xf32>
    %21 = tpu.matmul %20, %14, %cst_20 {dimension_numbers = #tpu.dot_dimension_numbers<[0], [0], [1], [1], [0, 1, 1, 1], [], []>} : vector<32x128xf32>, vector<32x256xf32>, vector<128x256xf32> -> vector<128x256xf32>
    %cst_21 = arith.constant dense<0xFF800000> : vector<128xf32>
    %22 = vector.multi_reduction <maximumf>, %21, %cst_21 [1] : vector<128x256xf32> to vector<128xf32>
    %23 = vector.shape_cast %22 : vector<128xf32> to vector<128x1xf32>
    %24 = vector.broadcast %23 : vector<128x1xf32> to vector<128x256xf32>
    %25 = arith.subf %21, %24 : vector<128x256xf32>
    %26 = math.exp %25 : vector<128x256xf32>
    %cst_22 = arith.constant dense<0.000000e+00> : vector<40x128xf32>
    %27 = tpu.matmul %15, %26, %cst_22 {dimension_numbers = #tpu.dot_dimension_numbers<[1], [1], [0], [0], [0, 0, 1, 0], [], []>} : vector<40x256xf32>, vector<128x256xf32>, vector<40x128xf32> -> vector<40x128xf32>
    %28 = vector.extract_strided_slice %27 {offsets = [32, 0], sizes = [1, 128], strides = [1, 1]} : vector<40x128xf32> to vector<1x128xf32>
    %29 = vector.extract_strided_slice %27 {offsets = [0, 0], sizes = [32, 128], strides = [1, 1]} : vector<40x128xf32> to vector<32x128xf32>
    %30 = tpu.reciprocal %28 : vector<1x128xf32> -> vector<1x128xf32>
    %31 = vector.broadcast %30 : vector<1x128xf32> to vector<32x128xf32>
    %32 = arith.mulf %29, %31 : vector<32x128xf32>
    %c0_23 = arith.constant 0 : index
    %c0_24 = arith.constant 0 : index
    %33 = vector.load %arg8[%c0_23, %c0_24] : memref<64x32xf32, #tpu.memory_space<vmem>>, vector<64x32xf32>
    %cst_25 = arith.constant dense<0.000000e+00> : vector<64x128xf32>
    %34 = tpu.matmul %33, %32, %cst_25 {dimension_numbers = #tpu.dot_dimension_numbers<[1], [0], [0], [1], [0, 0, 1, 1], [], []>} : vector<64x32xf32>, vector<32x128xf32>, vector<64x128xf32> -> vector<64x128xf32>
    %c0_26 = arith.constant 0 : index
    %c0_27 = arith.constant 0 : index
    %35 = vector.load %arg9[%c0_26, %c0_27] : memref<64x1xf32, #tpu.memory_space<vmem>>, vector<64x1xf32>
    %36 = vector.broadcast %35 : vector<64x1xf32> to vector<64x128xf32>
    %37 = arith.addf %34, %36 : vector<64x128xf32>
    %38 = arith.addf %37, %6 : vector<64x128xf32>
    %c0_28 = arith.constant 0 : index
    %c64 = arith.constant 64 : index
    %c0_29 = arith.constant 0 : index
    %39 = vector.load %arg10[%c0_28, %c64, %c0_29] : memref<1x128x128xf32, #tpu.memory_space<vmem>>, vector<1x64x128xf32>
    %40 = vector.shape_cast %39 : vector<1x64x128xf32> to vector<64x128xf32>
    %41 = vector.shape_cast %38 : vector<64x128xf32> to vector<1x64x128xf32>
    tpu.vector_store %arg10[%c0_28, %c64, %c0_29], %41 {strides = array<i32>} : memref<1x128x128xf32, #tpu.memory_space<vmem>>, vector<1x64x128xf32>,
    return
  }
  func.func @transform_0(%arg0: i32, %arg1: i32) -> (i32, i32, i32) {
    %c0_i32 = arith.constant 0 : i32
    %c0_i32_0 = arith.constant 0 : i32
    return %arg0, %c0_i32, %arg1 : i32, i32, i32
  }
  func.func @transform_1(%arg0: i32, %arg1: i32) -> (i32, i32, i32) {
    %c0_i32 = arith.constant 0 : i32
    %c0_i32_0 = arith.constant 0 : i32
    %c0_i32_1 = arith.constant 0 : i32
    return %arg0, %c0_i32, %c0_i32_0 : i32, i32, i32
  }
  func.func @transform_2(%arg0: i32, %arg1: i32) -> (i32, i32) {
    %c0_i32 = arith.constant 0 : i32
    %c0_i32_0 = arith.constant 0 : i32
    %c0_i32_1 = arith.constant 0 : i32
    return %c0_i32, %c0_i32_0 : i32, i32
  }
  func.func @transform_3(%arg0: i32, %arg1: i32) -> (i32, i32) {
    %c0_i32 = arith.constant 0 : i32
    %c0_i32_0 = arith.constant 0 : i32
    %c0_i32_1 = arith.constant 0 : i32
    return %c0_i32, %c0_i32_0 : i32, i32
  }
  func.func @transform_4(%arg0: i32, %arg1: i32) -> (i32, i32) {
    %c0_i32 = arith.constant 0 : i32
    %c0_i32_0 = arith.constant 0 : i32
    %c0_i32_1 = arith.constant 0 : i32
    return %c0_i32, %c0_i32_0 : i32, i32
  }
  func.func @transform_5(%arg0: i32, %arg1: i32) -> (i32, i32) {
    %c0_i32 = arith.constant 0 : i32
    %c0_i32_0 = arith.constant 0 : i32
    %c0_i32_1 = arith.constant 0 : i32
    return %c0_i32, %c0_i32_0 : i32, i32
  }
  func.func @transform_6(%arg0: i32, %arg1: i32) -> (i32, i32) {
    %c0_i32 = arith.constant 0 : i32
    %c0_i32_0 = arith.constant 0 : i32
    %c0_i32_1 = arith.constant 0 : i32
    return %c0_i32, %c0_i32_0 : i32, i32
  }
  func.func @transform_7(%arg0: i32, %arg1: i32) -> (i32, i32) {
    %c0_i32 = arith.constant 0 : i32
    %c0_i32_0 = arith.constant 0 : i32
    %c0_i32_1 = arith.constant 0 : i32
    return %c0_i32, %c0_i32_0 : i32, i32
  }
  func.func @transform_8(%arg0: i32, %arg1: i32) -> (i32, i32, i32) {
    %c0_i32 = arith.constant 0 : i32
    %c0_i32_0 = arith.constant 0 : i32
    return %arg0, %c0_i32, %arg1 : i32, i32, i32
  }
}

</mosaic_0001>

<llo_original>
// kernel: tpu_custom_call.1
$region0: #{tpu_custom_call.1}
  #allocation0 [shape = 'u32[]', space=smem, size = 0x4, offset = 0x4, fixed_abs, tag = 'smem constant byte address 0x4 - core index']
  #allocation1 [shape = 'u32[144,128]{1,0:T(1,128)}', space=vmem, size = 0x12000, scoped, tag = 'internal scratch']
  %s0 = inlined_call_operand.vmem [shape: f32[2,64,256], index: 0, kind: input, shape index: {}]
  %s1 = inlined_call_operand.hbm [shape: f32[2,64,256], index: 1, kind: input, shape index: {}]
  %s2 = inlined_call_operand.vmem [shape: f32[32,64], index: 2, kind: input, shape index: {}]
  %s3 = inlined_call_operand.vmem [shape: f32[32,1], index: 3, kind: input, shape index: {}]
  %s4 = inlined_call_operand.vmem [shape: f32[72,64], index: 4, kind: input, shape index: {}]
  %s5 = inlined_call_operand.vmem [shape: f32[72,1], index: 5, kind: input, shape index: {}]
  %s6 = inlined_call_operand.vmem [shape: f32[64,32], index: 6, kind: input, shape index: {}]
  %s7 = inlined_call_operand.vmem [shape: f32[64,1], index: 7, kind: input, shape index: {}]
  %s8 = inlined_call_operand.hbm [shape: f32[2,128,256], index: 8, kind: output, shape index: {}]
  %s9 = sld [smem:[#allocation0]]
  $region107: #{tpu_custom_call.1} parent=0
    _
  %s11 = ssub.s32 1, %s9
  %s12 = scalar_select 0, %s11, %s9
  $region1: #{tpu_custom_call.1} parent=0
    #allocation2 [shape = 'u8[65536]{0}', space=vmem, size = 0x10000, scoped, tag = 'input window, operand 0']
    #allocation3 [shape = 'u8[131072]{0}', space=vmem, size = 0x20000, scoped, tag = 'input window, operand 1']
    #allocation4 [shape = 's32[2]{0}', space=sflag, size = 0x8, scoped, tag = 'scoped memory for tpu_custom_call.1']
    #allocation5 [shape = 's32[2]{0}', space=sflag, size = 0x8, scoped, tag = 'scoped memory for tpu_custom_call.1']
    #allocation6 [shape = 'u8[131072]{0}', space=vmem, size = 0x20000, scoped, tag = 'output window, operand 0']
    %13 = vsyncpa [#allocation4], 0
    %s14 = scalar_lea.sflag [#allocation4], 1
    %15 = vsyncpa %s14, 0
    %16 = vsyncpa [#allocation5], 0
    %s17 = scalar_lea.sflag [#allocation5], 1
    %18 = vsyncpa %s17, 0
    loop: start=0, step=1, limit=6
    $region2: #{tpu_custom_call.1} parent=1 // loop_pre_header
      _
    $region3: #{tpu_custom_call.1} parent=1 // loop_header
      %s20 = sphi 0, %s24
      %p21 = scmp.ge.s32.totalorder %s20, 6
      %s27 = sphi 0, %s39
      %s28 = sphi 0, %s35
      %s29 = sphi 0, %s27
      %s30 = sphi 0, %s28
      %s31 = sphi 0, %s29
      %s32 = sphi 0, %s30
      %s44 = sphi 0, %s46
      %s47 = sphi 0, %s44
      %s48 = sphi 0, %s47
      %s64 = sphi 0, %s48
      %s70 = sphi 0, %s72
      %s73 = sphi 0, %s70
      %s74 = sphi 0, %s73
      %s90 = sphi 0, %s74
      %s94 = sphi 0, %s94
      %s96 = sphi 0, %s94
      %s97 = sphi 0, %s96
      %s111 = sphi 0, %s97
      %s115 = sphi 0, %s115
      %s117 = sphi 0, %s115
      %s118 = sphi 0, %s117
      %s132 = sphi 0, %s118
      %s136 = sphi 0, %s136
      %s138 = sphi 0, %s136
      %s139 = sphi 0, %s138
      %s153 = sphi 0, %s139
      %s157 = sphi 0, %s157
      %s159 = sphi 0, %s157
      %s160 = sphi 0, %s159
      %s174 = sphi 0, %s160
      %s178 = sphi 0, %s178
      %s180 = sphi 0, %s178
      %s181 = sphi 0, %s180
      %s195 = sphi 0, %s181
      %s199 = sphi 0, %s199
      %s201 = sphi 0, %s199
      %s202 = sphi 0, %s201
      %s216 = sphi 0, %s202
      %s224 = sphi 0, %s226
      %s227 = sphi 0, %s224
      %s228 = sphi 0, %s227
      %s244 = sphi 0, %s228
    $region4: #{tpu_custom_call.1} parent=1 // loop_header_branch
      %23 = sbr.rel (%p21) target = $region8
    $region5: #{tpu_custom_call.1} parent=1 // loop_body
      %s25 = ssub.s32 %s20, 1
      %s26 = ssub.s32 %s20, 2
      %s33 = sadd.s32 1, %s28
      %p34 = scmp.ge.s32.totalorder %s33, 2
      %s35 = scalar_select %p34, 0, %s33
      %s36 = sadd.s32 1, %s27
      %s37 = scalar_select %p34, %s36, %s27
      %p38 = scmp.ge.s32.totalorder %s37, 2
      %s39 = scalar_select %p38, 0, %s37
      %s40 = ssub.s32 %s27, %s39
      %s41 = ssub.s32 %s28, %s35
      %s42 = sor.u32 %s40, %s41
      %p43 = scmp.eq.s32.totalorder %s42, 0
      %s45 = sadd.s32 %s44, 1
      %s46 = scalar_select %p43, %s44, %s45
      %p49 = pneg %p43
      %p50 = scmp.eq.s32.totalorder %s20, 3
      %p51 = por %p49, %p50
      %p52 = scmp.ne.s32.totalorder %s44, %s47
      %p53 = scmp.eq.s32.totalorder %s20, 0
      %p54 = por %p52, %p53
      %p55 = scmp.ne.s32.totalorder %s44, %s47
      %p56 = scmp.eq.s32.totalorder %s25, 3
      %p57 = por %p55, %p56
      %p58 = scmp.ne.s32.totalorder %s47, %s48
      %p59 = scmp.eq.s32.totalorder %s25, 0
      %p60 = por %p58, %p59
      %p61 = scmp.ne.s32.totalorder %s47, %s48
      %p62 = scmp.eq.s32.totalorder %s26, 3
      %p63 = por %p61, %p62
      %p65 = scmp.ne.s32.totalorder %s48, %s64
      %p66 = scmp.eq.s32.totalorder %s26, 0
      %p67 = por %p65, %p66
      %s68 = ssub.s32 %s27, %s39
      %p69 = scmp.eq.s32.totalorder %s68, 0
      %s71 = sadd.s32 %s70, 1
      %s72 = scalar_select %p69, %s70, %s71
      %p75 = pneg %p69
      %p76 = scmp.eq.s32.totalorder %s20, 3
      %p77 = por %p75, %p76
      %p78 = scmp.ne.s32.totalorder %s70, %s73
      %p79 = scmp.eq.s32.totalorder %s20, 0
      %p80 = por %p78, %p79
      %p81 = scmp.ne.s32.totalorder %s70, %s73
      %p82 = scmp.eq.s32.totalorder %s25, 3
      %p83 = por %p81, %p82
      %p84 = scmp.ne.s32.totalorder %s73, %s74
      %p85 = scmp.eq.s32.totalorder %s25, 0
      %p86 = por %p84, %p85
      %p87 = scmp.ne.s32.totalorder %s73, %s74
      %p88 = scmp.eq.s32.totalorder %s26, 3
      %p89 = por %p87, %p88
      %p91 = scmp.ne.s32.totalorder %s74, %s90
      %p92 = scmp.eq.s32.totalorder %s26, 0
      %p93 = por %p91, %p92
      %s95 = sadd.s32 %s94, 1
      %p98 = scmp.eq.s32.totalorder %s20, 3
      %p99 = scmp.ne.s32.totalorder %s94, %s96
      %p100 = scmp.eq.s32.totalorder %s20, 0
      %p101 = por %p99, %p100
      %p102 = scmp.ne.s32.totalorder %s94, %s96
      %p103 = scmp.eq.s32.totalorder %s25, 3
      %p104 = por %p102, %p103
      %p105 = scmp.ne.s32.totalorder %s96, %s97
      %p106 = scmp.eq.s32.totalorder %s25, 0
      %p107 = por %p105, %p106
      %p108 = scmp.ne.s32.totalorder %s96, %s97
      %p109 = scmp.eq.s32.totalorder %s26, 3
      %p110 = por %p108, %p109
      %p112 = scmp.ne.s32.totalorder %s97, %s111
      %p113 = scmp.eq.s32.totalorder %s26, 0
      %p114 = por %p112, %p113
      %s116 = sadd.s32 %s115, 1
      %p119 = scmp.eq.s32.totalorder %s20, 3
      %p120 = scmp.ne.s32.totalorder %s115, %s117
      %p121 = scmp.eq.s32.totalorder %s20, 0
      %p122 = por %p120, %p121
      %p123 = scmp.ne.s32.totalorder %s115, %s117
      %p124 = scmp.eq.s32.totalorder %s25, 3
      %p125 = por %p123, %p124
      %p126 = scmp.ne.s32.totalorder %s117, %s118
      %p127 = scmp.eq.s32.totalorder %s25, 0
      %p128 = por %p126, %p127
      %p129 = scmp.ne.s32.totalorder %s117, %s118
      %p130 = scmp.eq.s32.totalorder %s26, 3
      %p131 = por %p129, %p130
      %p133 = scmp.ne.s32.totalorder %s118, %s132
      %p134 = scmp.eq.s32.totalorder %s26, 0
      %p135 = por %p133, %p134
      %s137 = sadd.s32 %s136, 1
      %p140 = scmp.eq.s32.totalorder %s20, 3
      %p141 = scmp.ne.s32.totalorder %s136, %s138
      %p142 = scmp.eq.s32.totalorder %s20, 0
      %p143 = por %p141, %p142
      %p144 = scmp.ne.s32.totalorder %s136, %s138
      %p145 = scmp.eq.s32.totalorder %s25, 3
      %p146 = por %p144, %p145
      %p147 = scmp.ne.s32.totalorder %s138, %s139
      %p148 = scmp.eq.s32.totalorder %s25, 0
      %p149 = por %p147, %p148
      %p150 = scmp.ne.s32.totalorder %s138, %s139
      %p151 = scmp.eq.s32.totalorder %s26, 3
      %p152 = por %p150, %p151
      %p154 = scmp.ne.s32.totalorder %s139, %s153
      %p155 = scmp.eq.s32.totalorder %s26, 0
      %p156 = por %p154, %p155
      %s158 = sadd.s32 %s157, 1
      %p161 = scmp.eq.s32.totalorder %s20, 3
      %p162 = scmp.ne.s32.totalorder %s157, %s159
      %p163 = scmp.eq.s32.totalorder %s20, 0
      %p164 = por %p162, %p163
      %p165 = scmp.ne.s32.totalorder %s157, %s159
      %p166 = scmp.eq.s32.totalorder %s25, 3
      %p167 = por %p165, %p166
      %p168 = scmp.ne.s32.totalorder %s159, %s160
      %p169 = scmp.eq.s32.totalorder %s25, 0
      %p170 = por %p168, %p169
      %p171 = scmp.ne.s32.totalorder %s159, %s160
      %p172 = scmp.eq.s32.totalorder %s26, 3
      %p173 = por %p171, %p172
      %p175 = scmp.ne.s32.totalorder %s160, %s174
      %p176 = scmp.eq.s32.totalorder %s26, 0
      %p177 = por %p175, %p176
      %s179 = sadd.s32 %s178, 1
      %p182 = scmp.eq.s32.totalorder %s20, 3
      %p183 = scmp.ne.s32.totalorder %s178, %s180
      %p184 = scmp.eq.s32.totalorder %s20, 0
      %p185 = por %p183, %p184
      %p186 = scmp.ne.s32.totalorder %s178, %s180
      %p187 = scmp.eq.s32.totalorder %s25, 3
      %p188 = por %p186, %p187
      %p189 = scmp.ne.s32.totalorder %s180, %s181
      %p190 = scmp.eq.s32.totalorder %s25, 0
      %p191 = por %p189, %p190
      %p192 = scmp.ne.s32.totalorder %s180, %s181
      %p193 = scmp.eq.s32.totalorder %s26, 3
      %p194 = por %p192, %p193
      %p196 = scmp.ne.s32.totalorder %s181, %s195
      %p197 = scmp.eq.s32.totalorder %s26, 0
      %p198 = por %p196, %p197
      %s200 = sadd.s32 %s199, 1
      %p203 = scmp.eq.s32.totalorder %s20, 3
      %p204 = scmp.ne.s32.totalorder %s199, %s201
      %p205 = scmp.eq.s32.totalorder %s20, 0
      %p206 = por %p204, %p205
      %p207 = scmp.ne.s32.totalorder %s199, %s201
      %p208 = scmp.eq.s32.totalorder %s25, 3
      %p209 = por %p207, %p208
      %p210 = scmp.ne.s32.totalorder %s201, %s202
      %p211 = scmp.eq.s32.totalorder %s25, 0
      %p212 = por %p210, %p211
      %p213 = scmp.ne.s32.totalorder %s201, %s202
      %p214 = scmp.eq.s32.totalorder %s26, 3
      %p215 = por %p213, %p214
      %p217 = scmp.ne.s32.totalorder %s202, %s216
      %p218 = scmp.eq.s32.totalorder %s26, 0
      %p219 = por %p217, %p218
      %s220 = ssub.s32 %s27, %s39
      %s221 = ssub.s32 %s28, %s35
      %s222 = sor.u32 %s220, %s221
      %p223 = scmp.eq.s32.totalorder %s222, 0
      %s225 = sadd.s32 %s224, 1
      %s226 = scalar_select %p223, %s224, %s225
      %p229 = pneg %p223
      %p230 = scmp.eq.s32.totalorder %s20, 3
      %p231 = por %p229, %p230
      %p232 = scmp.ne.s32.totalorder %s224, %s227
      %p233 = scmp.eq.s32.totalorder %s20, 0
      %p234 = por %p232, %p233
      %p235 = scmp.ne.s32.totalorder %s224, %s227
      %p236 = scmp.eq.s32.totalorder %s25, 3
      %p237 = por %p235, %p236
      %p238 = scmp.ne.s32.totalorder %s227, %s228
      %p239 = scmp.eq.s32.totalorder %s25, 0
      %p240 = por %p238, %p239
      %p241 = scmp.ne.s32.totalorder %s227, %s228
      %p242 = scmp.eq.s32.totalorder %s26, 3
      %p243 = por %p241, %p242
      %p245 = scmp.ne.s32.totalorder %s228, %s244
      %p246 = scmp.eq.s32.totalorder %s26, 0
      %p247 = por %p245, %p246
      %p248 = scmp.le.s32.totalorder 1, %s20
      %p249 = scmp.lt.s32.totalorder %s20, 5
      %p250 = pnand %p248, %p249
      %p251 = pneg %p250
      // Predicated region
      $region9: #{tpu_custom_call.1} parent=5 // pred_check
        _
      $region10: #{tpu_custom_call.1} parent=5 // pred_check_branch
        %253 = sbr.rel (%p250) target = $region12
      $region11: #{tpu_custom_call.1} parent=5 // pred_region
        %s254 = ssub.s32 %s20, 1
        // Predicated region
        $region13: #{tpu_custom_call.1} parent=11 // pred_check
          %p255 = pneg %p107
        $region14: #{tpu_custom_call.1} parent=11 // pred_check_branch
          %257 = sbr.rel (%p255) target = $region16
        $region15: #{tpu_custom_call.1} parent=11 // pred_region
          _
        $region16: #{tpu_custom_call.1} parent=11 // pred_fallthru
          _
        // Predicated region
        $region17: #{tpu_custom_call.1} parent=11 // pred_check
          %p258 = pneg %p128
        $region18: #{tpu_custom_call.1} parent=11 // pred_check_branch
          %260 = sbr.rel (%p258) target = $region20
        $region19: #{tpu_custom_call.1} parent=11 // pred_region
          _
        $region20: #{tpu_custom_call.1} parent=11 // pred_fallthru
          _
        // Predicated region
        $region21: #{tpu_custom_call.1} parent=11 // pred_check
          %p261 = pneg %p149
        $region22: #{tpu_custom_call.1} parent=11 // pred_check_branch
          %263 = sbr.rel (%p261) target = $region24
        $region23: #{tpu_custom_call.1} parent=11 // pred_region
          _
        $region24: #{tpu_custom_call.1} parent=11 // pred_fallthru
          _
        // Predicated region
        $region25: #{tpu_custom_call.1} parent=11 // pred_check
          %p264 = pneg %p170
        $region26: #{tpu_custom_call.1} parent=11 // pred_check_branch
          %266 = sbr.rel (%p264) target = $region28
        $region27: #{tpu_custom_call.1} parent=11 // pred_region
          _
        $region28: #{tpu_custom_call.1} parent=11 // pred_fallthru
          _
        // Predicated region
        $region29: #{tpu_custom_call.1} parent=11 // pred_check
          %p267 = pneg %p191
        $region30: #{tpu_custom_call.1} parent=11 // pred_check_branch
          %269 = sbr.rel (%p267) target = $region32
        $region31: #{tpu_custom_call.1} parent=11 // pred_region
          _
        $region32: #{tpu_custom_call.1} parent=11 // pred_fallthru
          _
        // Predicated region
        $region33: #{tpu_custom_call.1} parent=11 // pred_check
          %p270 = pneg %p212
        $region34: #{tpu_custom_call.1} parent=11 // pred_check_branch
          %272 = sbr.rel (%p270) target = $region36
        $region35: #{tpu_custom_call.1} parent=11 // pred_region
          _
        $region36: #{tpu_custom_call.1} parent=11 // pred_fallthru
          _
      $region12: #{tpu_custom_call.1} parent=5 // pred_fallthru
        _
      %p273 = scmp.lt.s32.totalorder %s20, 4
      // Predicated region
      $region37: #{tpu_custom_call.1} parent=5 // pred_check
        %p274 = pneg %p273
      $region38: #{tpu_custom_call.1} parent=5 // pred_check_branch
        %276 = sbr.rel (%p274) target = $region40
      $region39: #{tpu_custom_call.1} parent=5 // pred_region
        // Predicated region
        $region41: #{tpu_custom_call.1} parent=39 // pred_check
          %p277 = pneg %p54
        $region42: #{tpu_custom_call.1} parent=39 // pred_check_branch
          %279 = sbr.rel (%p277) target = $region44
        $region43: #{tpu_custom_call.1} parent=39 // pred_region
          %s280 = sand.u32 %s44, 1
          %s281 = sand.u32 %s44, 1
          %s282 = smul.addr %s281, 64
          %s283 = scalar_lea.vmem [#allocation2], %s282
          %s284 = smul.addr %s27, 16
          %s285 = sadd.s32 %s28, %s284
          %s286 = smul.addr %s285, 8
          %s287 = scalar_lea.vmem %s0, %s286
          // Predicated region
          $region45: #{tpu_custom_call.1} parent=43 // pred_check
            _
          $region46: #{tpu_custom_call.1} parent=43 // pred_check_branch
            %289 = sbr.rel (0) target = $region48
          $region47: #{tpu_custom_call.1} parent=43 // pred_region
            // Predicated region
            $region49: #{tpu_custom_call.1} parent=47 // pred_check
              _
            $region50: #{tpu_custom_call.1} parent=47 // pred_check_branch
              %291 = sbr.rel (0) target = $region52
            $region51: #{tpu_custom_call.1} parent=47 // pred_region
              // Predicated region
              $region64: #{tpu_custom_call.1} parent=51 // pred_check
                _
              $region65: #{tpu_custom_call.1} parent=51 // pred_check_branch
                %321 = sbr.rel (0) target = $region67
              $region66: #{tpu_custom_call.1} parent=51 // pred_region
                loop: start=0, step=1, limit=1
                $region68: #{tpu_custom_call.1} parent=66 // loop_pre_header
                  _
                $region69: #{tpu_custom_call.1} parent=66 // loop_header
                  %s323 = sphi 0, %s327
                  %p324 = scmp.ge.s32.totalorder %s323, 1
                  %s328 = sphi %s287, %s287
                  %s329 = sphi %s283, %s283
                $region70: #{tpu_custom_call.1} parent=66 // loop_header_branch
                  %326 = sbr.rel (%p324) target = $region74
                $region71: #{tpu_custom_call.1} parent=66 // loop_body
                  %v330 = vld [vmem:[%s328] sm:$0xff]
                  %331 = vst [vmem:[%s329] sm:$0xff] %v330
                  %v332 = vld [vmem:[%s328 + $0x10] sm:$0xff]
                  %333 = vst [vmem:[%s329 + $0x8] sm:$0xff] %v332
                  %v334 = vld [vmem:[%s328 + $0x20] sm:$0xff]
                  %335 = vst [vmem:[%s329 + $0x10] sm:$0xff] %v334
                  %v336 = vld [vmem:[%s328 + $0x30] sm:$0xff]
                  %337 = vst [vmem:[%s329 + $0x18] sm:$0xff] %v336
                  %v338 = vld [vmem:[%s328 + $0x40] sm:$0xff]
                  %339 = vst [vmem:[%s329 + $0x20] sm:$0xff] %v338
                  %v340 = vld [vmem:[%s328 + $0x50] sm:$0xff]
                  %341 = vst [vmem:[%s329 + $0x28] sm:$0xff] %v340
                  %v342 = vld [vmem:[%s328 + $0x60] sm:$0xff]
                  %343 = vst [vmem:[%s329 + $0x30] sm:$0xff] %v342
                  %v344 = vld [vmem:[%s328 + $0x70] sm:$0xff]
                  %345 = vst [vmem:[%s329 + $0x38] sm:$0xff] %v344
                $region72: #{tpu_custom_call.1} parent=66 // loop_footer
                  %s327 = sadd.s32 1, %s323
                $region73: #{tpu_custom_call.1} parent=66 // loop_footer_branch
                  %322 = sbr.rel target = $region69
                $region74: #{tpu_custom_call.1} parent=66 // loop_exit
                  _
              $region67: #{tpu_custom_call.1} parent=51 // pred_fallthru
                _
              // Predicated region
              $region75: #{tpu_custom_call.1} parent=51 // pred_check
                _
              $region76: #{tpu_custom_call.1} parent=51 // pred_check_branch
                %347 = sbr.rel target = $region78
              $region77: #{tpu_custom_call.1} parent=51 // pred_region
                _
              $region78: #{tpu_custom_call.1} parent=51 // pred_fallthru
                _
            $region52: #{tpu_custom_call.1} parent=47 // pred_fallthru
              _
            // Predicated region
            $region53: #{tpu_custom_call.1} parent=47 // pred_check
              _
            $region54: #{tpu_custom_call.1} parent=47 // pred_check_branch
              %293 = sbr.rel target = $region56
            $region55: #{tpu_custom_call.1} parent=47 // pred_region
              %s295 = ssub.s32 256, 1
              loop: start=0, step=1, limit=1
              $region57: #{tpu_custom_call.1} parent=55 // loop_pre_header
                _
              $region58: #{tpu_custom_call.1} parent=55 // loop_header
                %s297 = sphi 0, %s301
                %p298 = scmp.ge.s32.totalorder %s297, 1
                %s302 = sphi %s287, %s287
                %s303 = sphi %s283, %s283
              $region59: #{tpu_custom_call.1} parent=55 // loop_header_branch
                %300 = sbr.rel (%p298) target = $region63
              $region60: #{tpu_custom_call.1} parent=55 // loop_body
                %v304 = vld [vmem:[%s302] sm:%s295]
                %305 = vst [vmem:[%s303] sm:%s295] %v304
                %v306 = vld [vmem:[%s302 + $0x10] sm:%s295]
                %307 = vst [vmem:[%s303 + $0x8] sm:%s295] %v306
                %v308 = vld [vmem:[%s302 + $0x20] sm:%s295]
                %309 = vst [vmem:[%s303 + $0x10] sm:%s295] %v308
                %v310 = vld [vmem:[%s302 + $0x30] sm:%s295]
                %311 = vst [vmem:[%s303 + $0x18] sm:%s295] %v310
                %v312 = vld [vmem:[%s302 + $0x40] sm:%s295]
                %313 = vst [vmem:[%s303 + $0x20] sm:%s295] %v312
                %v314 = vld [vmem:[%s302 + $0x50] sm:%s295]
                %315 = vst [vmem:[%s303 + $0x28] sm:%s295] %v314
                %v316 = vld [vmem:[%s302 + $0x60] sm:%s295]
                %317 = vst [vmem:[%s303 + $0x30] sm:%s295] %v316
                %v318 = vld [vmem:[%s302 + $0x70] sm:%s295]
                %319 = vst [vmem:[%s303 + $0x38] sm:%s295] %v318
              $region61: #{tpu_custom_call.1} parent=55 // loop_footer
                %s301 = sadd.s32 1, %s297
              $region62: #{tpu_custom_call.1} parent=55 // loop_footer_branch
                %296 = sbr.rel target = $region58
              $region63: #{tpu_custom_call.1} parent=55 // loop_exit
                _
            $region56: #{tpu_custom_call.1} parent=47 // pred_fallthru
              _
          $region48: #{tpu_custom_call.1} parent=43 // pred_fallthru
            _
          %348 = vnop
        $region44: #{tpu_custom_call.1} parent=39 // pred_fallthru
          _
        // Predicated region
        $region79: #{tpu_custom_call.1} parent=39 // pred_check
          %p349 = pneg %p80
        $region80: #{tpu_custom_call.1} parent=39 // pred_check_branch
          %351 = sbr.rel (%p349) target = $region82
        $region81: #{tpu_custom_call.1} parent=39 // pred_region
          %s352 = sand.u32 %s70, 1
          %s353 = scalar_lea.sflag [#allocation4], %s352
          %s354 = sand.u32 %s70, 1
          %s355 = smul.addr %s354, 128
          %s356 = scalar_lea.vmem [#allocation3], %s355
          %s358 = ssub.s32 2048, 2048
          %359 = vsyncadd %s353, %s358
          %s360 = smul.addr %s27, 16
          %s361 = smul.addr %s360, 128
          %s362 = scalar_lea.hbm %s1, %s361
          %s363 = sshll.u32 %s356, 4
          %s364 = int_to_ptr.vmem [resolvable:$true] %s363
          %369 = dma.hbm_to_vmem [thread:$0]  %s362, 2048, %s364, %s353, 256, 256, 16
        $region82: #{tpu_custom_call.1} parent=39 // pred_fallthru
          _
      $region40: #{tpu_custom_call.1} parent=5 // pred_fallthru
        _
      %p370 = scmp.le.s32.totalorder 1, %s20
      %p371 = scmp.lt.s32.totalorder %s20, 5
      %p372 = pnand %p370, %p371
      %p373 = pneg %p372
      // Predicated region
      $region83: #{tpu_custom_call.1} parent=5 // pred_check
        _
      $region84: #{tpu_custom_call.1} parent=5 // pred_check_branch
        %375 = sbr.rel (%p372) target = $region86
      $region85: #{tpu_custom_call.1} parent=5 // pred_region
        %s376 = ssub.s32 %s20, 1
        %s377 = sand.u32 %s47, 1
        %s378 = sand.u32 %s47, 1
        %s379 = smul.addr %s378, 64
        %s380 = scalar_lea.vmem [#allocation2], %s379
        // Predicated region
        $region87: #{tpu_custom_call.1} parent=85 // pred_check
          %p381 = pneg %p60
        $region88: #{tpu_custom_call.1} parent=85 // pred_check_branch
          %383 = sbr.rel (%p381) target = $region90
        $region89: #{tpu_custom_call.1} parent=85 // pred_region
          _
        $region90: #{tpu_custom_call.1} parent=85 // pred_fallthru
          _
        %s384 = sand.u32 %s73, 1
        %s385 = scalar_lea.sflag [#allocation4], %s384
        %s386 = sand.u32 %s73, 1
        %s387 = smul.addr %s386, 128
        %s388 = scalar_lea.vmem [#allocation3], %s387
        // Predicated region
        $region91: #{tpu_custom_call.1} parent=85 // pred_check
          %p389 = pneg %p86
        $region92: #{tpu_custom_call.1} parent=85 // pred_check_branch
          %391 = sbr.rel (%p389) target = $region94
        $region93: #{tpu_custom_call.1} parent=85 // pred_region
          %392 = dma.done %s385, 2048
        $region94: #{tpu_custom_call.1} parent=85 // pred_fallthru
          _
        %s393 = sand.u32 %s47, 1
        %s394 = sand.u32 %s47, 1
        %s395 = smul.addr %s394, 64
        %s396 = scalar_lea.vmem [#allocation2], %s395
        %p397 = pneg %p60
        %p398 = pneg %p57
        %s399 = sand.u32 %s73, 1
        %s400 = scalar_lea.sflag [#allocation4], %s399
        %s401 = sand.u32 %s73, 1
        %s402 = smul.addr %s401, 128
        %s403 = scalar_lea.vmem [#allocation3], %s402
        %p404 = pneg %p86
        %p405 = pneg %p83
        %p406 = pneg %p107
        %p407 = pneg %p104
        %p408 = pneg %p128
        %p409 = pneg %p125
        %p410 = pneg %p149
        %p411 = pneg %p146
        %p412 = pneg %p170
        %p413 = pneg %p167
        %p414 = pneg %p191
        %p415 = pneg %p188
        %p416 = pneg %p212
        %p417 = pneg %p209
        %p418 = pneg %p240
        %p419 = pneg %p237
        %s420 = sand.u32 %s227, 1
        %s421 = scalar_lea.sflag [#allocation5], %s420
        %s422 = sand.u32 %s227, 1
        %s423 = smul.addr %s422, 128
        %s424 = scalar_lea.vmem [#allocation6], %s423
        %v425 = vld [vmem:[%s380] sm:$0xff]
        %v426 = vld [vmem:[%s380 + $0x8] sm:$0xff]
        %v427 = vld [vmem:[%s380 + $0x10] sm:$0xff]
        %v428 = vld [vmem:[%s380 + $0x18] sm:$0xff]
        %v429 = vld [vmem:[%s380 + $0x20] sm:$0xff]
        %v430 = vld [vmem:[%s380 + $0x28] sm:$0xff]
        %v431 = vld [vmem:[%s380 + $0x30] sm:$0xff]
        %v432 = vld [vmem:[%s380 + $0x38] sm:$0xff]
        %433 = vst [vmem:[%s424] sm:$0xff] %v425
        %434 = vst [vmem:[%s424 + $0x8] sm:$0xff] %v426
        %435 = vst [vmem:[%s424 + $0x10] sm:$0xff] %v427
        %436 = vst [vmem:[%s424 + $0x18] sm:$0xff] %v428
        %437 = vst [vmem:[%s424 + $0x20] sm:$0xff] %v429
        %438 = vst [vmem:[%s424 + $0x28] sm:$0xff] %v430
        %439 = vst [vmem:[%s424 + $0x30] sm:$0xff] %v431
        %440 = vst [vmem:[%s424 + $0x38] sm:$0xff] %v432
        %v441 = vld [vmem:[%s380] sm:$0xff]
        %v442 = vld [vmem:[%s380 + $0x8] sm:$0xff]
        %v443 = vld [vmem:[%s380 + $0x10] sm:$0xff]
        %v444 = vld [vmem:[%s380 + $0x18] sm:$0xff]
        %v445 = vld [vmem:[%s380 + $0x20] sm:$0xff]
        %v446 = vld [vmem:[%s380 + $0x28] sm:$0xff]
        %v447 = vld [vmem:[%s380 + $0x30] sm:$0xff]
        %v448 = vld [vmem:[%s380 + $0x38] sm:$0xff]
        %v449 = vld [vmem:[%s388] sm:$0xff]
        %v450 = vld [vmem:[%s388 + $0x8] sm:$0xff]
        %v451 = vld [vmem:[%s388 + $0x10] sm:$0xff]
        %v452 = vld [vmem:[%s388 + $0x18] sm:$0xff]
        %v453 = vld [vmem:[%s388 + $0x20] sm:$0xff]
        %v454 = vld [vmem:[%s388 + $0x28] sm:$0xff]
        %v455 = vld [vmem:[%s388 + $0x30] sm:$0xff]
        %v456 = vld [vmem:[%s388 + $0x38] sm:$0xff]
        %v457 = vld [vmem:[%s388 + $0x40] sm:$0xff]
        %v458 = vld [vmem:[%s388 + $0x48] sm:$0xff]
        %v459 = vld [vmem:[%s388 + $0x50] sm:$0xff]
        %v460 = vld [vmem:[%s388 + $0x58] sm:$0xff]
        %v461 = vld [vmem:[%s388 + $0x60] sm:$0xff]
        %v462 = vld [vmem:[%s388 + $0x68] sm:$0xff]
        %v463 = vld [vmem:[%s388 + $0x70] sm:$0xff]
        %v464 = vld [vmem:[%s388 + $0x78] sm:$0xff]
        %v465 = vld [vmem:[%s4] sm:$0xff]
        %v466 = vld [vmem:[%s4 + $0x8] sm:$0xff]
        %v467 = vld [vmem:[%s4 + $0x10] sm:$0xff]
        %v468 = vld [vmem:[%s4 + $0x18] sm:$0xff]
        %v469 = vld [vmem:[%s4 + $0x20] sm:$0xff]
        %v470 = vld [vmem:[%s4 + $0x28] sm:$0xff]
        %v471 = vld [vmem:[%s4 + $0x30] sm:$0xff]
        %v472 = vld [vmem:[%s4 + $0x38] sm:$0xff]
        %v473 = vld [vmem:[%s4 + $0x40] sm:$0xff]
        %v474 = vld [vmem:[%s5] sm:$0xff]
        %v475 = vld [vmem:[%s5 + $0x8] sm:$0xff]
        %v476 = vld [vmem:[%s5 + $0x10] sm:$0xff]
        %v477 = vld [vmem:[%s5 + $0x18] sm:$0xff]
        %v478 = vld [vmem:[%s5 + $0x20] sm:$0xff]
        %v479 = vld [vmem:[%s5 + $0x28] sm:$0xff]
        %v480 = vld [vmem:[%s5 + $0x30] sm:$0xff]
        %v481 = vld [vmem:[%s5 + $0x38] sm:$0xff]
        %v482 = vld [vmem:[%s5 + $0x40] sm:$0xff]
        %484 = vset.pattern.permute.xlu0 0
        %485 = vperm.xlu0 %484, %v474
        %v486 = vpop.permute.xlu0 %485
        %489 = vset.pattern.permute.xlu0 0
        %490 = vperm.xlu0 %489, %v475
        %v491 = vpop.permute.xlu0 %490
        %494 = vset.pattern.permute.xlu0 0
        %495 = vperm.xlu0 %494, %v476
        %v496 = vpop.permute.xlu0 %495
        %499 = vset.pattern.permute.xlu0 0
        %500 = vperm.xlu0 %499, %v477
        %v501 = vpop.permute.xlu0 %500
        %504 = vset.pattern.permute.xlu0 0
        %505 = vperm.xlu0 %504, %v478
        %v506 = vpop.permute.xlu0 %505
        %509 = vset.pattern.permute.xlu0 0
        %510 = vperm.xlu0 %509, %v479
        %v511 = vpop.permute.xlu0 %510
        %514 = vset.pattern.permute.xlu0 0
        %515 = vperm.xlu0 %514, %v480
        %v516 = vpop.permute.xlu0 %515
        %519 = vset.pattern.permute.xlu0 0
        %520 = vperm.xlu0 %519, %v481
        %v521 = vpop.permute.xlu0 %520
        %524 = vset.pattern.permute.xlu0 0
        %525 = vperm.xlu0 %524, %v482
        %v526 = vpop.permute.xlu0 %525
        %vm528 = vcmask 523264
        %v530 = vsel %vm528, %v465, 0
        %v533 = vsel %vm528, %v466, 0
        %v536 = vsel %vm528, %v467, 0
        %v539 = vsel %vm528, %v468, 0
        %v542 = vsel %vm528, %v469, 0
        %v545 = vsel %vm528, %v470, 0
        %v548 = vsel %vm528, %v471, 0
        %v551 = vsel %vm528, %v472, 0
        %v554 = vsel %vm528, %v473, 0
        %556 = vmatprep.subr.mxu0 0.0
        %557 = vmatpush1.msra.mxu0 0.0
        %558 = vmatprep.subr.mxu0 0.0
        %559 = vmatpush1.msra.mxu0 0.0
        %560 = vmatprep.subr.mxu0 0.0
        %561 = vmatpush1.msra.mxu0 0.0
        %562 = vmatprep.subr.mxu0 0.0
        %563 = vmatpush1.msra.mxu0 0.0
        %564 = vmatprep.subr.mxu0 0.0
        %565 = vmatpush1.msra.mxu0 0.0
        %566 = vmatprep.subr.mxu0 0.0
        %567 = vmatpush1.msra.mxu0 0.0
        %568 = vmatprep.subr.mxu0 0.0
        %569 = vmatpush1.msra.mxu0 0.0
        %570 = vmatprep.subr.mxu0 0.0
        %571 = vmatpush1.msra.mxu0 0.0
        %572 = vmatprep.subr.mxu0 %v464
        %573 = vmatpush1.msra.mxu0 %v463
        %574 = vmatprep.subr.mxu0 %v462
        %575 = vmatpush1.msra.mxu0 %v461
        %576 = vmatprep.subr.mxu0 %v460
        %577 = vmatpush1.msra.mxu0 %v459
        %578 = vmatprep.subr.mxu0 %v458
        %579 = vmatpush1.msra.mxu0 %v457
        %580 = vmatprep.subr.mxu0 %v456
        %581 = vmatpush1.msra.mxu0 %v455
        %582 = vmatprep.subr.mxu0 %v454
        %583 = vmatpush1.msra.mxu0 %v453
        %584 = vmatprep.subr.mxu0 %v452
        %585 = vmatpush1.msra.mxu0 %v451
        %586 = vmatprep.subr.mxu0 %v450
        %587 = vmatpush1.msra.mxu0 %v449
        %588 = vmatprep.subr.mxu0 0.0
        %589 = vmatpush2.msra.mxu0 0.0
        %590 = vmatprep.subr.mxu0 0.0
        %591 = vmatpush2.msra.mxu0 0.0
        %592 = vmatprep.subr.mxu0 0.0
        %593 = vmatpush2.msra.mxu0 0.0
        %594 = vmatprep.subr.mxu0 0.0
        %595 = vmatpush2.msra.mxu0 0.0
        %596 = vmatprep.subr.mxu0 0.0
        %597 = vmatpush2.msra.mxu0 0.0
        %598 = vmatprep.subr.mxu0 0.0
        %599 = vmatpush2.msra.mxu0 0.0
        %600 = vmatprep.subr.mxu0 0.0
        %601 = vmatpush2.msra.mxu0 0.0
        %602 = vmatprep.subr.mxu0 0.0
        %603 = vmatpush2.msra.mxu0 0.0
        %604 = vmatprep.subr.mxu0 0.0
        %605 = vmatpush2.msra.mxu0 0.0
        %606 = vmatprep.subr.mxu0 0.0
        %607 = vmatpush2.msra.mxu0 0.0
        %608 = vmatprep.subr.mxu0 0.0
        %609 = vmatpush2.msra.mxu0 0.0
        %610 = vmatprep.subr.mxu0 0.0
        %611 = vmatpush2.msra.mxu0 0.0
        %612 = vmatprep.subr.mxu0 0.0
        %613 = vmatpush2.msra.mxu0 0.0
        %614 = vmatprep.subr.mxu0 0.0
        %615 = vmatpush2.msra.mxu0 0.0
        %616 = vmatprep.subr.mxu0 0.0
        %617 = vmatpush2.msra.mxu0 0.0
        %618 = vmatprep.subr.mxu0 0.0
        %619 = vmatpush2.msra.mxu0 0.0
        %620 = vmatprep.mubr.f32.mxu0 0.0
        %621 = vmatmul.mubr.f32.gmra.mxu0 %v530
        %v622 = vpop.f32.mrf.mxu0
        %v623 = vadd.f32 %v486, %v622
        %v624 = vpop.f32.mrf.mxu0
        %v625 = vadd.f32 %v486, %v624
        %626 = vmatprep.mubr.f32.mxu0 0.0
        %627 = vmatmul.mubr.f32.gmra.mxu0 %v533
        %v628 = vpop.f32.mrf.mxu0
        %v629 = vadd.f32 %v491, %v628
        %v630 = vpop.f32.mrf.mxu0
        %v631 = vadd.f32 %v491, %v630
        %632 = vmatprep.mubr.f32.mxu0 0.0
        %633 = vmatmul.mubr.f32.gmra.mxu0 %v536
        %v634 = vpop.f32.mrf.mxu0
        %v635 = vadd.f32 %v496, %v634
        %v636 = vpop.f32.mrf.mxu0
        %v637 = vadd.f32 %v496, %v636
        %638 = vmatprep.mubr.f32.mxu0 0.0
        %639 = vmatmul.mubr.f32.gmra.mxu0 %v539
        %v640 = vpop.f32.mrf.mxu0
        %v641 = vadd.f32 %v501, %v640
        %v642 = vpop.f32.mrf.mxu0
        %v643 = vadd.f32 %v501, %v642
        %644 = vmatprep.mubr.f32.mxu0 0.0
        %645 = vmatmul.mubr.f32.gmra.mxu0 %v542
        %v646 = vpop.f32.mrf.mxu0
        %v647 = vadd.f32 %v506, %v646
        %v648 = vpop.f32.mrf.mxu0
        %v649 = vadd.f32 %v506, %v648
        %650 = vmatprep.mubr.f32.mxu0 0.0
        %651 = vmatmul.mubr.f32.gmra.mxu0 %v545
        %v652 = vpop.f32.mrf.mxu0
        %v653 = vadd.f32 %v511, %v652
        %v654 = vpop.f32.mrf.mxu0
        %v655 = vadd.f32 %v511, %v654
        %656 = vmatprep.mubr.f32.mxu0 0.0
        %657 = vmatmul.mubr.f32.gmra.mxu0 %v548
        %v658 = vpop.f32.mrf.mxu0
        %v659 = vadd.f32 %v516, %v658
        %v660 = vpop.f32.mrf.mxu0
        %v661 = vadd.f32 %v516, %v660
        %662 = vmatprep.mubr.f32.mxu0 0.0
        %663 = vmatmul.mubr.f32.gmra.mxu0 %v551
        %v664 = vpop.f32.mrf.mxu0
        %v665 = vadd.f32 %v521, %v664
        %v666 = vpop.f32.mrf.mxu0
        %v667 = vadd.f32 %v521, %v666
        %668 = vmatprep.mubr.f32.mxu0 0.0
        %669 = vmatmul.mubr.f32.gmra.mxu0 %v554
        %v670 = vpop.f32.mrf.mxu0
        %v671 = vadd.f32 %v526, %v670
        %v672 = vpop.f32.mrf.mxu0
        %v673 = vadd.f32 %v526, %v672
        %674 = vdwg.mxu0
        %v675 = vld [vmem:[%s2] sm:$0xff]
        %v676 = vld [vmem:[%s2 + $0x8] sm:$0xff]
        %v677 = vld [vmem:[%s2 + $0x10] sm:$0xff]
        %v678 = vld [vmem:[%s2 + $0x18] sm:$0xff]
        %v679 = vld [vmem:[%s3] sm:$0xff]
        %v680 = vld [vmem:[%s3 + $0x8] sm:$0xff]
        %v681 = vld [vmem:[%s3 + $0x10] sm:$0xff]
        %v682 = vld [vmem:[%s3 + $0x18] sm:$0xff]
        %684 = vset.pattern.permute.xlu0 0
        %685 = vperm.xlu0 %684, %v679
        %v686 = vpop.permute.xlu0 %685
        %689 = vset.pattern.permute.xlu0 0
        %690 = vperm.xlu0 %689, %v680
        %v691 = vpop.permute.xlu0 %690
        %694 = vset.pattern.permute.xlu0 0
        %695 = vperm.xlu0 %694, %v681
        %v696 = vpop.permute.xlu0 %695
        %699 = vset.pattern.permute.xlu0 0
        %700 = vperm.xlu0 %699, %v682
        %v701 = vpop.permute.xlu0 %700
        %v704 = vsel %vm528, %v675, 0
        %v707 = vsel %vm528, %v676, 0
        %v710 = vsel %vm528, %v677, 0
        %v713 = vsel %vm528, %v678, 0
        %715 = vmatprep.subr.mxu0 0.0
        %716 = vmatpush1.msra.mxu0 0.0
        %717 = vmatprep.subr.mxu0 0.0
        %718 = vmatpush1.msra.mxu0 0.0
        %719 = vmatprep.subr.mxu0 0.0
        %720 = vmatpush1.msra.mxu0 0.0
        %721 = vmatprep.subr.mxu0 0.0
        %722 = vmatpush1.msra.mxu0 0.0
        %723 = vmatprep.subr.mxu0 0.0
        %724 = vmatpush1.msra.mxu0 0.0
        %725 = vmatprep.subr.mxu0 0.0
        %726 = vmatpush1.msra.mxu0 0.0
        %727 = vmatprep.subr.mxu0 0.0
        %728 = vmatpush1.msra.mxu0 0.0
        %729 = vmatprep.subr.mxu0 0.0
        %730 = vmatpush1.msra.mxu0 0.0
        %731 = vmatprep.subr.mxu0 0.0
        %732 = vmatpush1.msra.mxu0 %v448
        %733 = vmatprep.subr.mxu0 0.0
        %734 = vmatpush1.msra.mxu0 %v447
        %735 = vmatprep.subr.mxu0 0.0
        %736 = vmatpush1.msra.mxu0 %v446
        %737 = vmatprep.subr.mxu0 0.0
        %738 = vmatpush1.msra.mxu0 %v445
        %739 = vmatprep.subr.mxu0 0.0
        %740 = vmatpush1.msra.mxu0 %v444
        %741 = vmatprep.subr.mxu0 0.0
        %742 = vmatpush1.msra.mxu0 %v443
        %743 = vmatprep.subr.mxu0 0.0
        %744 = vmatpush1.msra.mxu0 %v442
        %745 = vmatprep.subr.mxu0 0.0
        %746 = vmatpush1.msra.mxu0 %v441
        %747 = vmatprep.subr.mxu0 0.0
        %748 = vmatpush2.msra.mxu0 0.0
        %749 = vmatprep.subr.mxu0 0.0
        %750 = vmatpush2.msra.mxu0 0.0
        %751 = vmatprep.subr.mxu0 0.0
        %752 = vmatpush2.msra.mxu0 0.0
        %753 = vmatprep.subr.mxu0 0.0
        %754 = vmatpush2.msra.mxu0 0.0
        %755 = vmatprep.subr.mxu0 0.0
        %756 = vmatpush2.msra.mxu0 0.0
        %757 = vmatprep.subr.mxu0 0.0
        %758 = vmatpush2.msra.mxu0 0.0
        %759 = vmatprep.subr.mxu0 0.0
        %760 = vmatpush2.msra.mxu0 0.0
        %761 = vmatprep.subr.mxu0 0.0
        %762 = vmatpush2.msra.mxu0 0.0
        %763 = vmatprep.subr.mxu0 0.0
        %764 = vmatpush2.msra.mxu0 0.0
        %765 = vmatprep.subr.mxu0 0.0
        %766 = vmatpush2.msra.mxu0 0.0
        %767 = vmatprep.subr.mxu0 0.0
        %768 = vmatpush2.msra.mxu0 0.0
        %769 = vmatprep.subr.mxu0 0.0
        %770 = vmatpush2.msra.mxu0 0.0
        %771 = vmatprep.subr.mxu0 0.0
        %772 = vmatpush2.msra.mxu0 0.0
        %773 = vmatprep.subr.mxu0 0.0
        %774 = vmatpush2.msra.mxu0 0.0
        %775 = vmatprep.subr.mxu0 0.0
        %776 = vmatpush2.msra.mxu0 0.0
        %777 = vmatprep.subr.mxu0 0.0
        %778 = vmatpush2.msra.mxu0 0.0
        %779 = vmatprep.mubr.f32.mxu0 0.0
        %780 = vmatmul.mubr.f32.gmra.mxu0 %v704
        %v781 = vpop.f32.mrf.mxu0
        %v782 = vadd.f32 %v686, %v781
        %v783 = vpop.f32.mrf.mxu0
        %784 = vmatprep.mubr.f32.mxu0 0.0
        %785 = vmatmul.mubr.f32.gmra.mxu0 %v707
        %v786 = vpop.f32.mrf.mxu0
        %v787 = vadd.f32 %v691, %v786
        %v788 = vpop.f32.mrf.mxu0
        %789 = vmatprep.mubr.f32.mxu0 0.0
        %790 = vmatmul.mubr.f32.gmra.mxu0 %v710
        %v791 = vpop.f32.mrf.mxu0
        %v792 = vadd.f32 %v696, %v791
        %v793 = vpop.f32.mrf.mxu0
        %794 = vmatprep.mubr.f32.mxu0 0.0
        %795 = vmatmul.mubr.f32.gmra.mxu0 %v713
        %v796 = vpop.f32.mrf.mxu0
        %v797 = vadd.f32 %v701, %v796
        %v798 = vpop.f32.mrf.mxu0
        %799 = vdwg.mxu0
        %800 = vxpose.xlu0.b32.start [1/16] %v782, 128
        %801 = vxpose.xlu0.b32.cont [2/16] %v787, 128
        %802 = vxpose.xlu0.b32.cont [3/16] %v792, 128
        %803 = vxpose.xlu0.b32.cont [4/16] %v797, 128
        %804 = vxpose.xlu0.b32.cont [5/16] 0.0, 128
        %805 = vxpose.xlu0.b32.cont [6/16] 0.0, 128
        %806 = vxpose.xlu0.b32.cont [7/16] 0.0, 128
        %807 = vxpose.xlu0.b32.cont [8/16] 0.0, 128
        %808 = vxpose.xlu0.b32.cont [9/16] 0.0, 128
        %809 = vxpose.xlu0.b32.cont [10/16] 0.0, 128
        %810 = vxpose.xlu0.b32.cont [11/16] 0.0, 128
        %811 = vxpose.xlu0.b32.cont [12/16] 0.0, 128
        %812 = vxpose.xlu0.b32.cont [13/16] 0.0, 128
        %813 = vxpose.xlu0.b32.cont [14/16] 0.0, 128
        %814 = vxpose.xlu0.b32.cont [15/16] 0.0, 128
        %815 = vxpose.xlu0.b32.end [16/16] 0.0, 128
        %v816 = vpop.trf.xlu0
        %v817 = vpop.trf.xlu0
        %v818 = vpop.trf.xlu0
        %v819 = vpop.trf.xlu0
        %v820 = vpop.trf.xlu0
        %v821 = vpop.trf.xlu0
        %v822 = vpop.trf.xlu0
        %v823 = vpop.trf.xlu0
        %v824 = vpop.trf.xlu0
        %v825 = vpop.trf.xlu0
        %v826 = vpop.trf.xlu0
        %v827 = vpop.trf.xlu0
        %v828 = vpop.trf.xlu0
        %v829 = vpop.trf.xlu0
        %v830 = vpop.trf.xlu0
        %v831 = vpop.trf.xlu0
        %vm832 = vcmask 261120
        %v834 = vsel %vm832, %v816, 0
        %v837 = vsel %vm832, %v817, 0
        %v840 = vsel %vm832, %v818, 0
        %v843 = vsel %vm832, %v819, 0
        %v846 = vsel %vm832, %v820, 0
        %v849 = vsel %vm832, %v821, 0
        %v852 = vsel %vm832, %v822, 0
        %v855 = vsel %vm832, %v823, 0
        %v858 = vsel %vm832, %v824, 0
        %v861 = vsel %vm832, %v825, 0
        %v864 = vsel %vm832, %v826, 0
        %v867 = vsel %vm832, %v827, 0
        %v870 = vsel %vm832, %v828, 0
        %v873 = vsel %vm832, %v829, 0
        %v876 = vsel %vm832, %v830, 0
        %v879 = vsel %vm832, %v831, 0
        %881 = vmatprep.subr.mxu0 0.0
        %882 = vmatpush1.msra.mxu0 0.0
        %883 = vmatprep.subr.mxu0 0.0
        %884 = vmatpush1.msra.mxu0 0.0
        %885 = vmatprep.subr.mxu0 0.0
        %886 = vmatpush1.msra.mxu0 0.0
        %887 = vmatprep.subr.mxu0 0.0
        %888 = vmatpush1.msra.mxu0 0.0
        %889 = vmatprep.subr.mxu0 0.0
        %890 = vmatpush1.msra.mxu0 0.0
        %891 = vmatprep.subr.mxu0 0.0
        %892 = vmatpush1.msra.mxu0 0.0
        %893 = vmatprep.subr.mxu0 0.0
        %894 = vmatpush1.msra.mxu0 0.0
        %895 = vmatprep.subr.mxu0 0.0
        %896 = vmatpush1.msra.mxu0 0.0
        %897 = vmatprep.subr.mxu0 0.0
        %898 = vmatpush1.msra.mxu0 0.0
        %899 = vmatprep.subr.mxu0 0.0
        %900 = vmatpush1.msra.mxu0 0.0
        %901 = vmatprep.subr.mxu0 0.0
        %902 = vmatpush1.msra.mxu0 0.0
        %903 = vmatprep.subr.mxu0 0.0
        %904 = vmatpush1.msra.mxu0 0.0
        %905 = vmatprep.subr.mxu0 %v643
        %906 = vmatpush1.msra.mxu0 %v641
        %907 = vmatprep.subr.mxu0 %v637
        %908 = vmatpush1.msra.mxu0 %v635
        %909 = vmatprep.subr.mxu0 %v631
        %910 = vmatpush1.msra.mxu0 %v629
        %911 = vmatprep.subr.mxu0 %v625
        %912 = vmatpush1.msra.mxu0 %v623
        %913 = vmatprep.subr.mxu0 0.0
        %914 = vmatpush2.msra.mxu0 0.0
        %915 = vmatprep.subr.mxu0 0.0
        %916 = vmatpush2.msra.mxu0 0.0
        %917 = vmatprep.subr.mxu0 0.0
        %918 = vmatpush2.msra.mxu0 0.0
        %919 = vmatprep.subr.mxu0 0.0
        %920 = vmatpush2.msra.mxu0 0.0
        %921 = vmatprep.subr.mxu0 0.0
        %922 = vmatpush2.msra.mxu0 0.0
        %923 = vmatprep.subr.mxu0 0.0
        %924 = vmatpush2.msra.mxu0 0.0
        %925 = vmatprep.subr.mxu0 0.0
        %926 = vmatpush2.msra.mxu0 0.0
        %927 = vmatprep.subr.mxu0 0.0
        %928 = vmatpush2.msra.mxu0 0.0
        %929 = vmatprep.subr.mxu0 0.0
        %930 = vmatpush2.msra.mxu0 0.0
        %931 = vmatprep.subr.mxu0 0.0
        %932 = vmatpush2.msra.mxu0 0.0
        %933 = vmatprep.subr.mxu0 0.0
        %934 = vmatpush2.msra.mxu0 0.0
        %935 = vmatprep.subr.mxu0 0.0
        %936 = vmatpush2.msra.mxu0 0.0
        %937 = vmatprep.subr.mxu0 0.0
        %938 = vmatpush2.msra.mxu0 0.0
        %939 = vmatprep.subr.mxu0 0.0
        %940 = vmatpush2.msra.mxu0 0.0
        %941 = vmatprep.subr.mxu0 0.0
        %942 = vmatpush2.msra.mxu0 0.0
        %943 = vmatprep.subr.mxu0 0.0
        %944 = vmatpush2.msra.mxu0 0.0
        %945 = vmatprep.mubr.f32.mxu0 0.0
        %946 = vmatmul.mubr.f32.gmra.mxu0 %v834
        %v947 = vpop.f32.mrf.mxu0
        %v948 = vadd.f32 0.0, %v947
        %v949 = vpop.f32.mrf.mxu0
        %v950 = vadd.f32 0.0, %v949
        %951 = vmatprep.mubr.f32.mxu0 0.0
        %952 = vmatmul.mubr.f32.gmra.mxu0 %v837
        %v953 = vpop.f32.mrf.mxu0
        %v954 = vadd.f32 0.0, %v953
        %v955 = vpop.f32.mrf.mxu0
        %v956 = vadd.f32 0.0, %v955
        %957 = vmatprep.mubr.f32.mxu0 0.0
        %958 = vmatmul.mubr.f32.gmra.mxu0 %v840
        %v959 = vpop.f32.mrf.mxu0
        %v960 = vadd.f32 0.0, %v959
        %v961 = vpop.f32.mrf.mxu0
        %v962 = vadd.f32 0.0, %v961
        %963 = vmatprep.mubr.f32.mxu0 0.0
        %964 = vmatmul.mubr.f32.gmra.mxu0 %v843
        %v965 = vpop.f32.mrf.mxu0
        %v966 = vadd.f32 0.0, %v965
        %v967 = vpop.f32.mrf.mxu0
        %v968 = vadd.f32 0.0, %v967
        %969 = vmatprep.mubr.f32.mxu0 0.0
        %970 = vmatmul.mubr.f32.gmra.mxu0 %v846
        %v971 = vpop.f32.mrf.mxu0
        %v972 = vadd.f32 0.0, %v971
        %v973 = vpop.f32.mrf.mxu0
        %v974 = vadd.f32 0.0, %v973
        %975 = vmatprep.mubr.f32.mxu0 0.0
        %976 = vmatmul.mubr.f32.gmra.mxu0 %v849
        %v977 = vpop.f32.mrf.mxu0
        %v978 = vadd.f32 0.0, %v977
        %v979 = vpop.f32.mrf.mxu0
        %v980 = vadd.f32 0.0, %v979
        %981 = vmatprep.mubr.f32.mxu0 0.0
        %982 = vmatmul.mubr.f32.gmra.mxu0 %v852
        %v983 = vpop.f32.mrf.mxu0
        %v984 = vadd.f32 0.0, %v983
        %v985 = vpop.f32.mrf.mxu0
        %v986 = vadd.f32 0.0, %v985
        %987 = vmatprep.mubr.f32.mxu0 0.0
        %988 = vmatmul.mubr.f32.gmra.mxu0 %v855
        %v989 = vpop.f32.mrf.mxu0
        %v990 = vadd.f32 0.0, %v989
        %v991 = vpop.f32.mrf.mxu0
        %v992 = vadd.f32 0.0, %v991
        %993 = vmatprep.mubr.f32.mxu0 0.0
        %994 = vmatmul.mubr.f32.gmra.mxu0 %v858
        %v995 = vpop.f32.mrf.mxu0
        %v996 = vadd.f32 0.0, %v995
        %v997 = vpop.f32.mrf.mxu0
        %v998 = vadd.f32 0.0, %v997
        %999 = vmatprep.mubr.f32.mxu0 0.0
        %1000 = vmatmul.mubr.f32.gmra.mxu0 %v861
        %v1001 = vpop.f32.mrf.mxu0
        %v1002 = vadd.f32 0.0, %v1001
        %v1003 = vpop.f32.mrf.mxu0
        %v1004 = vadd.f32 0.0, %v1003
        %1005 = vmatprep.mubr.f32.mxu0 0.0
        %1006 = vmatmul.mubr.f32.gmra.mxu0 %v864
        %v1007 = vpop.f32.mrf.mxu0
        %v1008 = vadd.f32 0.0, %v1007
        %v1009 = vpop.f32.mrf.mxu0
        %v1010 = vadd.f32 0.0, %v1009
        %1011 = vmatprep.mubr.f32.mxu0 0.0
        %1012 = vmatmul.mubr.f32.gmra.mxu0 %v867
        %v1013 = vpop.f32.mrf.mxu0
        %v1014 = vadd.f32 0.0, %v1013
        %v1015 = vpop.f32.mrf.mxu0
        %v1016 = vadd.f32 0.0, %v1015
        %1017 = vmatprep.mubr.f32.mxu0 0.0
        %1018 = vmatmul.mubr.f32.gmra.mxu0 %v870
        %v1019 = vpop.f32.mrf.mxu0
        %v1020 = vadd.f32 0.0, %v1019
        %v1021 = vpop.f32.mrf.mxu0
        %v1022 = vadd.f32 0.0, %v1021
        %1023 = vmatprep.mubr.f32.mxu0 0.0
        %1024 = vmatmul.mubr.f32.gmra.mxu0 %v873
        %v1025 = vpop.f32.mrf.mxu0
        %v1026 = vadd.f32 0.0, %v1025
        %v1027 = vpop.f32.mrf.mxu0
        %v1028 = vadd.f32 0.0, %v1027
        %1029 = vmatprep.mubr.f32.mxu0 0.0
        %1030 = vmatmul.mubr.f32.gmra.mxu0 %v876
        %v1031 = vpop.f32.mrf.mxu0
        %v1032 = vadd.f32 0.0, %v1031
        %v1033 = vpop.f32.mrf.mxu0
        %v1034 = vadd.f32 0.0, %v1033
        %1035 = vmatprep.mubr.f32.mxu0 0.0
        %1036 = vmatmul.mubr.f32.gmra.mxu0 %v879
        %v1037 = vpop.f32.mrf.mxu0
        %v1038 = vadd.f32 0.0, %v1037
        %v1039 = vpop.f32.mrf.mxu0
        %v1040 = vadd.f32 0.0, %v1039
        %1041 = vdwg.mxu0
        %v1042 = vmax.f32 %v948, %v950
        %1043 = vmax.xlane.f32.xlu0 %v1042
        %v1044 = vpop.xlane.xlu0 %1043
        %v1045 = vmax.f32 %v954, %v956
        %1046 = vmax.xlane.f32.xlu0 %v1045
        %v1047 = vpop.xlane.xlu0 %1046
        %v1048 = vmax.f32 %v960, %v962
        %1049 = vmax.xlane.f32.xlu0 %v1048
        %v1050 = vpop.xlane.xlu0 %1049
        %v1051 = vmax.f32 %v966, %v968
        %1052 = vmax.xlane.f32.xlu0 %v1051
        %v1053 = vpop.xlane.xlu0 %1052
        %v1054 = vmax.f32 %v972, %v974
        %1055 = vmax.xlane.f32.xlu0 %v1054
        %v1056 = vpop.xlane.xlu0 %1055
        %v1057 = vmax.f32 %v978, %v980
        %1058 = vmax.xlane.f32.xlu0 %v1057
        %v1059 = vpop.xlane.xlu0 %1058
        %v1060 = vmax.f32 %v984, %v986
        %1061 = vmax.xlane.f32.xlu0 %v1060
        %v1062 = vpop.xlane.xlu0 %1061
        %v1063 = vmax.f32 %v990, %v992
        %1064 = vmax.xlane.f32.xlu0 %v1063
        %v1065 = vpop.xlane.xlu0 %1064
        %v1066 = vmax.f32 %v996, %v998
        %1067 = vmax.xlane.f32.xlu0 %v1066
        %v1068 = vpop.xlane.xlu0 %1067
        %v1069 = vmax.f32 %v1002, %v1004
        %1070 = vmax.xlane.f32.xlu0 %v1069
        %v1071 = vpop.xlane.xlu0 %1070
        %v1072 = vmax.f32 %v1008, %v1010
        %1073 = vmax.xlane.f32.xlu0 %v1072
        %v1074 = vpop.xlane.xlu0 %1073
        %v1075 = vmax.f32 %v1014, %v1016
        %1076 = vmax.xlane.f32.xlu0 %v1075
        %v1077 = vpop.xlane.xlu0 %1076
        %v1078 = vmax.f32 %v1020, %v1022
        %1079 = vmax.xlane.f32.xlu0 %v1078
        %v1080 = vpop.xlane.xlu0 %1079
        %v1081 = vmax.f32 %v1026, %v1028
        %1082 = vmax.xlane.f32.xlu0 %v1081
        %v1083 = vpop.xlane.xlu0 %1082
        %v1084 = vmax.f32 %v1032, %v1034
        %1085 = vmax.xlane.f32.xlu0 %v1084
        %v1086 = vpop.xlane.xlu0 %1085
        %v1087 = vmax.f32 %v1038, %v1040
        %1088 = vmax.xlane.f32.xlu0 %v1087
        %v1089 = vpop.xlane.xlu0 %1088
        %v1090 = vsub.f32 %v948, %v1044
        %v1091 = vsub.f32 %v950, %v1044
        %v1092 = vsub.f32 %v954, %v1047
        %v1093 = vsub.f32 %v956, %v1047
        %v1094 = vsub.f32 %v960, %v1050
        %v1095 = vsub.f32 %v962, %v1050
        %v1096 = vsub.f32 %v966, %v1053
        %v1097 = vsub.f32 %v968, %v1053
        %v1098 = vsub.f32 %v972, %v1056
        %v1099 = vsub.f32 %v974, %v1056
        %v1100 = vsub.f32 %v978, %v1059
        %v1101 = vsub.f32 %v980, %v1059
        %v1102 = vsub.f32 %v984, %v1062
        %v1103 = vsub.f32 %v986, %v1062
        %v1104 = vsub.f32 %v990, %v1065
        %v1105 = vsub.f32 %v992, %v1065
        %v1106 = vsub.f32 %v996, %v1068
        %v1107 = vsub.f32 %v998, %v1068
        %v1108 = vsub.f32 %v1002, %v1071
        %v1109 = vsub.f32 %v1004, %v1071
        %v1110 = vsub.f32 %v1008, %v1074
        %v1111 = vsub.f32 %v1010, %v1074
        %v1112 = vsub.f32 %v1014, %v1077
        %v1113 = vsub.f32 %v1016, %v1077
        %v1114 = vsub.f32 %v1020, %v1080
        %v1115 = vsub.f32 %v1022, %v1080
        %v1116 = vsub.f32 %v1026, %v1083
        %v1117 = vsub.f32 %v1028, %v1083
        %v1118 = vsub.f32 %v1032, %v1086
        %v1119 = vsub.f32 %v1034, %v1086
        %v1120 = vsub.f32 %v1038, %v1089
        %v1121 = vsub.f32 %v1040, %v1089
        %v1122 = vmul.f32 %v1090, 1.442695
        %v1123 = vpow.pop %v1122
        %v1124 = vmul.f32 %v1091, 1.442695
        %v1125 = vpow.pop %v1124
        %v1126 = vmul.f32 %v1092, 1.442695
        %v1127 = vpow.pop %v1126
        %v1128 = vmul.f32 %v1093, 1.442695
        %v1129 = vpow.pop %v1128
        %v1130 = vmul.f32 %v1094, 1.442695
        %v1131 = vpow.pop %v1130
        %v1132 = vmul.f32 %v1095, 1.442695
        %v1133 = vpow.pop %v1132
        %v1134 = vmul.f32 %v1096, 1.442695
        %v1135 = vpow.pop %v1134
        %v1136 = vmul.f32 %v1097, 1.442695
        %v1137 = vpow.pop %v1136
        %v1138 = vmul.f32 %v1098, 1.442695
        %v1139 = vpow.pop %v1138
        %v1140 = vmul.f32 %v1099, 1.442695
        %v1141 = vpow.pop %v1140
        %v1142 = vmul.f32 %v1100, 1.442695
        %v1143 = vpow.pop %v1142
        %v1144 = vmul.f32 %v1101, 1.442695
        %v1145 = vpow.pop %v1144
        %v1146 = vmul.f32 %v1102, 1.442695
        %v1147 = vpow.pop %v1146
        %v1148 = vmul.f32 %v1103, 1.442695
        %v1149 = vpow.pop %v1148
        %v1150 = vmul.f32 %v1104, 1.442695
        %v1151 = vpow.pop %v1150
        %v1152 = vmul.f32 %v1105, 1.442695
        %v1153 = vpow.pop %v1152
        %v1154 = vmul.f32 %v1106, 1.442695
        %v1155 = vpow.pop %v1154
        %v1156 = vmul.f32 %v1107, 1.442695
        %v1157 = vpow.pop %v1156
        %v1158 = vmul.f32 %v1108, 1.442695
        %v1159 = vpow.pop %v1158
        %v1160 = vmul.f32 %v1109, 1.442695
        %v1161 = vpow.pop %v1160
        %v1162 = vmul.f32 %v1110, 1.442695
        %v1163 = vpow.pop %v1162
        %v1164 = vmul.f32 %v1111, 1.442695
        %v1165 = vpow.pop %v1164
        %v1166 = vmul.f32 %v1112, 1.442695
        %v1167 = vpow.pop %v1166
        %v1168 = vmul.f32 %v1113, 1.442695
        %v1169 = vpow.pop %v1168
        %v1170 = vmul.f32 %v1114, 1.442695
        %v1171 = vpow.pop %v1170
        %v1172 = vmul.f32 %v1115, 1.442695
        %v1173 = vpow.pop %v1172
        %v1174 = vmul.f32 %v1116, 1.442695
        %v1175 = vpow.pop %v1174
        %v1176 = vmul.f32 %v1117, 1.442695
        %v1177 = vpow.pop %v1176
        %v1178 = vmul.f32 %v1118, 1.442695
        %v1179 = vpow.pop %v1178
        %v1180 = vmul.f32 %v1119, 1.442695
        %v1181 = vpow.pop %v1180
        %v1182 = vmul.f32 %v1120, 1.442695
        %v1183 = vpow.pop %v1182
        %v1184 = vmul.f32 %v1121, 1.442695
        %v1185 = vpow.pop %v1184
        %1186 = vmatprep.subr.mxu0 %v1185
        %1187 = vmatpush1.xpose.msra.mxu0 %v1183
        %1188 = vmatprep.subr.mxu0 %v1181
        %1189 = vmatpush1.xpose.msra.mxu0 %v1179
        %1190 = vmatprep.subr.mxu0 %v1177
        %1191 = vmatpush1.xpose.msra.mxu0 %v1175
        %1192 = vmatprep.subr.mxu0 %v1173
        %1193 = vmatpush1.xpose.msra.mxu0 %v1171
        %1194 = vmatprep.subr.mxu0 %v1169
        %1195 = vmatpush1.xpose.msra.mxu0 %v1167
        %1196 = vmatprep.subr.mxu0 %v1165
        %1197 = vmatpush1.xpose.msra.mxu0 %v1163
        %1198 = vmatprep.subr.mxu0 %v1161
        %1199 = vmatpush1.xpose.msra.mxu0 %v1159
        %1200 = vmatprep.subr.mxu0 %v1157
        %1201 = vmatpush1.xpose.msra.mxu0 %v1155
        %1202 = vmatprep.subr.mxu0 %v1153
        %1203 = vmatpush1.xpose.msra.mxu0 %v1151
        %1204 = vmatprep.subr.mxu0 %v1149
        %1205 = vmatpush1.xpose.msra.mxu0 %v1147
        %1206 = vmatprep.subr.mxu0 %v1145
        %1207 = vmatpush1.xpose.msra.mxu0 %v1143
        %1208 = vmatprep.subr.mxu0 %v1141
        %1209 = vmatpush1.xpose.msra.mxu0 %v1139
        %1210 = vmatprep.subr.mxu0 %v1137
        %1211 = vmatpush1.xpose.msra.mxu0 %v1135
        %1212 = vmatprep.subr.mxu0 %v1133
        %1213 = vmatpush1.xpose.msra.mxu0 %v1131
        %1214 = vmatprep.subr.mxu0 %v1129
        %1215 = vmatpush1.xpose.msra.mxu0 %v1127
        %1216 = vmatprep.subr.mxu0 %v1125
        %1217 = vmatpush1.xpose.msra.mxu0 %v1123
        %1218 = vmatprep.subr.mxu0 0.0
        %1219 = vmatpush2.xpose.msra.mxu0 0.0
        %1220 = vmatprep.subr.mxu0 0.0
        %1221 = vmatpush2.xpose.msra.mxu0 0.0
        %1222 = vmatprep.subr.mxu0 0.0
        %1223 = vmatpush2.xpose.msra.mxu0 0.0
        %1224 = vmatprep.subr.mxu0 0.0
        %1225 = vmatpush2.xpose.msra.mxu0 0.0
        %1226 = vmatprep.subr.mxu0 0.0
        %1227 = vmatpush2.xpose.msra.mxu0 0.0
        %1228 = vmatprep.subr.mxu0 0.0
        %1229 = vmatpush2.xpose.msra.mxu0 0.0
        %1230 = vmatprep.subr.mxu0 0.0
        %1231 = vmatpush2.xpose.msra.mxu0 0.0
        %1232 = vmatprep.subr.mxu0 0.0
        %1233 = vmatpush2.xpose.msra.mxu0 0.0
        %1234 = vmatprep.subr.mxu0 0.0
        %1235 = vmatpush2.xpose.msra.mxu0 0.0
        %1236 = vmatprep.subr.mxu0 0.0
        %1237 = vmatpush2.xpose.msra.mxu0 0.0
        %1238 = vmatprep.subr.mxu0 0.0
        %1239 = vmatpush2.xpose.msra.mxu0 0.0
        %1240 = vmatprep.subr.mxu0 0.0
        %1241 = vmatpush2.xpose.msra.mxu0 0.0
        %1242 = vmatprep.subr.mxu0 0.0
        %1243 = vmatpush2.xpose.msra.mxu0 0.0
        %1244 = vmatprep.subr.mxu0 0.0
        %1245 = vmatpush2.xpose.msra.mxu0 0.0
        %1246 = vmatprep.subr.mxu0 0.0
        %1247 = vmatpush2.xpose.msra.mxu0 0.0
        %1248 = vmatprep.subr.mxu0 0.0
        %1249 = vmatpush2.xpose.msra.mxu0 0.0
        %1250 = vmatprep.mubr.f32.mxu0 %v649
        %1251 = vmatmul.mubr.f32.gmra.mxu0 %v647
        %v1252 = vpop.f32.mrf.mxu0
        %v1253 = vadd.f32 0.0, %v1252
        %v1254 = vpop.f32.mrf.mxu0
        %1255 = vmatprep.mubr.f32.mxu0 %v655
        %1256 = vmatmul.mubr.f32.gmra.mxu0 %v653
        %v1257 = vpop.f32.mrf.mxu0
        %v1258 = vadd.f32 0.0, %v1257
        %v1259 = vpop.f32.mrf.mxu0
        %1260 = vmatprep.mubr.f32.mxu0 %v661
        %1261 = vmatmul.mubr.f32.gmra.mxu0 %v659
        %v1262 = vpop.f32.mrf.mxu0
        %v1263 = vadd.f32 0.0, %v1262
        %v1264 = vpop.f32.mrf.mxu0
        %1265 = vmatprep.mubr.f32.mxu0 %v667
        %1266 = vmatmul.mubr.f32.gmra.mxu0 %v665
        %v1267 = vpop.f32.mrf.mxu0
        %v1268 = vadd.f32 0.0, %v1267
        %v1269 = vpop.f32.mrf.mxu0
        %1270 = vmatprep.mubr.f32.mxu0 %v673
        %1271 = vmatmul.mubr.f32.gmra.mxu0 %v671
        %v1272 = vpop.f32.mrf.mxu0
        %v1273 = vadd.f32 0.0, %v1272
        %v1274 = vpop.f32.mrf.mxu0
        %1275 = vdwg.mxu0
        %v1276 = vrcp.pop %v1273
        %v1277 = vlaneseq
        %v1278 = vshrl.u32 %v1277, 7
        %v1279 = vsub.s32 0, %v1278
        %v1280 = vrot.slane %v1276, %v1279
        %v1281 = vmul.f32 %v1253, %v1280
        %v1282 = vmul.f32 %v1258, %v1280
        %v1283 = vmul.f32 %v1263, %v1280
        %v1284 = vmul.f32 %v1268, %v1280
        %v1285 = vld [vmem:[%s6] sm:$0xff]
        %v1286 = vld [vmem:[%s6 + $0x8] sm:$0xff]
        %v1287 = vld [vmem:[%s6 + $0x10] sm:$0xff]
        %v1288 = vld [vmem:[%s6 + $0x18] sm:$0xff]
        %v1289 = vld [vmem:[%s6 + $0x20] sm:$0xff]
        %v1290 = vld [vmem:[%s6 + $0x28] sm:$0xff]
        %v1291 = vld [vmem:[%s6 + $0x30] sm:$0xff]
        %v1292 = vld [vmem:[%s6 + $0x38] sm:$0xff]
        %v1293 = vld [vmem:[%s7] sm:$0xff]
        %v1294 = vld [vmem:[%s7 + $0x8] sm:$0xff]
        %v1295 = vld [vmem:[%s7 + $0x10] sm:$0xff]
        %v1296 = vld [vmem:[%s7 + $0x18] sm:$0xff]
        %v1297 = vld [vmem:[%s7 + $0x20] sm:$0xff]
        %v1298 = vld [vmem:[%s7 + $0x28] sm:$0xff]
        %v1299 = vld [vmem:[%s7 + $0x30] sm:$0xff]
        %v1300 = vld [vmem:[%s7 + $0x38] sm:$0xff]
        %1302 = vset.pattern.permute.xlu0 0
        %1303 = vperm.xlu0 %1302, %v1293
        %v1304 = vpop.permute.xlu0 %1303
        %1307 = vset.pattern.permute.xlu0 0
        %1308 = vperm.xlu0 %1307, %v1294
        %v1309 = vpop.permute.xlu0 %1308
        %1312 = vset.pattern.permute.xlu0 0
        %1313 = vperm.xlu0 %1312, %v1295
        %v1314 = vpop.permute.xlu0 %1313
        %1317 = vset.pattern.permute.xlu0 0
        %1318 = vperm.xlu0 %1317, %v1296
        %v1319 = vpop.permute.xlu0 %1318
        %1322 = vset.pattern.permute.xlu0 0
        %1323 = vperm.xlu0 %1322, %v1297
        %v1324 = vpop.permute.xlu0 %1323
        %1327 = vset.pattern.permute.xlu0 0
        %1328 = vperm.xlu0 %1327, %v1298
        %v1329 = vpop.permute.xlu0 %1328
        %1332 = vset.pattern.permute.xlu0 0
        %1333 = vperm.xlu0 %1332, %v1299
        %v1334 = vpop.permute.xlu0 %1333
        %1337 = vset.pattern.permute.xlu0 0
        %1338 = vperm.xlu0 %1337, %v1300
        %v1339 = vpop.permute.xlu0 %1338
        %v1342 = vsel %vm832, %v1285, 0
        %v1345 = vsel %vm832, %v1286, 0
        %v1348 = vsel %vm832, %v1287, 0
        %v1351 = vsel %vm832, %v1288, 0
        %v1354 = vsel %vm832, %v1289, 0
        %v1357 = vsel %vm832, %v1290, 0
        %v1360 = vsel %vm832, %v1291, 0
        %v1363 = vsel %vm832, %v1292, 0
        %1365 = vmatprep.subr.mxu0 0.0
        %1366 = vmatpush1.msra.mxu0 0.0
        %1367 = vmatprep.subr.mxu0 0.0
        %1368 = vmatpush1.msra.mxu0 0.0
        %1369 = vmatprep.subr.mxu0 0.0
        %1370 = vmatpush1.msra.mxu0 0.0
        %1371 = vmatprep.subr.mxu0 0.0
        %1372 = vmatpush1.msra.mxu0 0.0
        %1373 = vmatprep.subr.mxu0 0.0
        %1374 = vmatpush1.msra.mxu0 0.0
        %1375 = vmatprep.subr.mxu0 0.0
        %1376 = vmatpush1.msra.mxu0 0.0
        %1377 = vmatprep.subr.mxu0 0.0
        %1378 = vmatpush1.msra.mxu0 0.0
        %1379 = vmatprep.subr.mxu0 0.0
        %1380 = vmatpush1.msra.mxu0 0.0
        %1381 = vmatprep.subr.mxu0 0.0
        %1382 = vmatpush1.msra.mxu0 0.0
        %1383 = vmatprep.subr.mxu0 0.0
        %1384 = vmatpush1.msra.mxu0 0.0
        %1385 = vmatprep.subr.mxu0 0.0
        %1386 = vmatpush1.msra.mxu0 0.0
        %1387 = vmatprep.subr.mxu0 0.0
        %1388 = vmatpush1.msra.mxu0 0.0
        %1389 = vmatprep.subr.mxu0 0.0
        %1390 = vmatpush1.msra.mxu0 %v1284
        %1391 = vmatprep.subr.mxu0 0.0
        %1392 = vmatpush1.msra.mxu0 %v1283
        %1393 = vmatprep.subr.mxu0 0.0
        %1394 = vmatpush1.msra.mxu0 %v1282
        %1395 = vmatprep.subr.mxu0 0.0
        %1396 = vmatpush1.msra.mxu0 %v1281
        %1397 = vmatprep.subr.mxu0 0.0
        %1398 = vmatpush2.msra.mxu0 0.0
        %1399 = vmatprep.subr.mxu0 0.0
        %1400 = vmatpush2.msra.mxu0 0.0
        %1401 = vmatprep.subr.mxu0 0.0
        %1402 = vmatpush2.msra.mxu0 0.0
        %1403 = vmatprep.subr.mxu0 0.0
        %1404 = vmatpush2.msra.mxu0 0.0
        %1405 = vmatprep.subr.mxu0 0.0
        %1406 = vmatpush2.msra.mxu0 0.0
        %1407 = vmatprep.subr.mxu0 0.0
        %1408 = vmatpush2.msra.mxu0 0.0
        %1409 = vmatprep.subr.mxu0 0.0
        %1410 = vmatpush2.msra.mxu0 0.0
        %1411 = vmatprep.subr.mxu0 0.0
        %1412 = vmatpush2.msra.mxu0 0.0
        %1413 = vmatprep.subr.mxu0 0.0
        %1414 = vmatpush2.msra.mxu0 0.0
        %1415 = vmatprep.subr.mxu0 0.0
        %1416 = vmatpush2.msra.mxu0 0.0
        %1417 = vmatprep.subr.mxu0 0.0
        %1418 = vmatpush2.msra.mxu0 0.0
        %1419 = vmatprep.subr.mxu0 0.0
        %1420 = vmatpush2.msra.mxu0 0.0
        %1421 = vmatprep.subr.mxu0 0.0
        %1422 = vmatpush2.msra.mxu0 0.0
        %1423 = vmatprep.subr.mxu0 0.0
        %1424 = vmatpush2.msra.mxu0 0.0
        %1425 = vmatprep.subr.mxu0 0.0
        %1426 = vmatpush2.msra.mxu0 0.0
        %1427 = vmatprep.subr.mxu0 0.0
        %1428 = vmatpush2.msra.mxu0 0.0
        %1429 = vmatprep.mubr.f32.mxu0 0.0
        %1430 = vmatmul.mubr.f32.gmra.mxu0 %v1342
        %v1431 = vpop.f32.mrf.mxu0
        %v1432 = vadd.f32 %v1304, %v1431
        %v1433 = vpop.f32.mrf.mxu0
        %1434 = vmatprep.mubr.f32.mxu0 0.0
        %1435 = vmatmul.mubr.f32.gmra.mxu0 %v1345
        %v1436 = vpop.f32.mrf.mxu0
        %v1437 = vadd.f32 %v1309, %v1436
        %v1438 = vpop.f32.mrf.mxu0
        %1439 = vmatprep.mubr.f32.mxu0 0.0
        %1440 = vmatmul.mubr.f32.gmra.mxu0 %v1348
        %v1441 = vpop.f32.mrf.mxu0
        %v1442 = vadd.f32 %v1314, %v1441
        %v1443 = vpop.f32.mrf.mxu0
        %1444 = vmatprep.mubr.f32.mxu0 0.0
        %1445 = vmatmul.mubr.f32.gmra.mxu0 %v1351
        %v1446 = vpop.f32.mrf.mxu0
        %v1447 = vadd.f32 %v1319, %v1446
        %v1448 = vpop.f32.mrf.mxu0
        %1449 = vmatprep.mubr.f32.mxu0 0.0
        %1450 = vmatmul.mubr.f32.gmra.mxu0 %v1354
        %v1451 = vpop.f32.mrf.mxu0
        %v1452 = vadd.f32 %v1324, %v1451
        %v1453 = vpop.f32.mrf.mxu0
        %1454 = vmatprep.mubr.f32.mxu0 0.0
        %1455 = vmatmul.mubr.f32.gmra.mxu0 %v1357
        %v1456 = vpop.f32.mrf.mxu0
        %v1457 = vadd.f32 %v1329, %v1456
        %v1458 = vpop.f32.mrf.mxu0
        %1459 = vmatprep.mubr.f32.mxu0 0.0
        %1460 = vmatmul.mubr.f32.gmra.mxu0 %v1360
        %v1461 = vpop.f32.mrf.mxu0
        %v1462 = vadd.f32 %v1334, %v1461
        %v1463 = vpop.f32.mrf.mxu0
        %1464 = vmatprep.mubr.f32.mxu0 0.0
        %1465 = vmatmul.mubr.f32.gmra.mxu0 %v1363
        %v1466 = vpop.f32.mrf.mxu0
        %v1467 = vadd.f32 %v1339, %v1466
        %v1468 = vpop.f32.mrf.mxu0
        %1469 = vdwg.mxu0
        %v1470 = vadd.f32 %v1432, %v441
        %v1471 = vadd.f32 %v1437, %v442
        %v1472 = vadd.f32 %v1442, %v443
        %v1473 = vadd.f32 %v1447, %v444
        %v1474 = vadd.f32 %v1452, %v445
        %v1475 = vadd.f32 %v1457, %v446
        %v1476 = vadd.f32 %v1462, %v447
        %v1477 = vadd.f32 %v1467, %v448
        %1478 = vst [vmem:[%s424 + $0x40] sm:$0xff] %v1470
        %1479 = vst [vmem:[%s424 + $0x48] sm:$0xff] %v1471
        %1480 = vst [vmem:[%s424 + $0x50] sm:$0xff] %v1472
        %1481 = vst [vmem:[%s424 + $0x58] sm:$0xff] %v1473
        %1482 = vst [vmem:[%s424 + $0x60] sm:$0xff] %v1474
        %1483 = vst [vmem:[%s424 + $0x68] sm:$0xff] %v1475
        %1484 = vst [vmem:[%s424 + $0x70] sm:$0xff] %v1476
        %1485 = vst [vmem:[%s424 + $0x78] sm:$0xff] %v1477
        %s1486 = sand.u32 %s227, 1
        %s1487 = scalar_lea.sflag [#allocation5], %s1486
        %s1488 = sand.u32 %s227, 1
        %s1489 = smul.addr %s1488, 128
        %s1490 = scalar_lea.vmem [#allocation6], %s1489
        // Predicated region
        $region95: #{tpu_custom_call.1} parent=85 // pred_check
          %p1491 = pneg %p237
        $region96: #{tpu_custom_call.1} parent=85 // pred_check_branch
          %1493 = sbr.rel (%p1491) target = $region98
        $region97: #{tpu_custom_call.1} parent=85 // pred_region
          %s1495 = ssub.s32 2048, 2048
          %1496 = vsyncadd %s1487, %s1495
          %s1497 = smul.addr %s29, 32
          %s1498 = sadd.s32 %s30, %s1497
          %s1499 = smul.addr %s1498, 128
          %s1500 = scalar_lea.hbm %s8, %s1499
          %s1501 = sshll.u32 %s1490, 4
          %s1502 = int_to_ptr.vmem [resolvable:$true] %s1501
          %1507 = dma.vmem_to_hbm [thread:$0]  %s1502, 2048, %s1500, %s1487, 128, 256, 8
        $region98: #{tpu_custom_call.1} parent=85 // pred_fallthru
          _
      $region86: #{tpu_custom_call.1} parent=5 // pred_fallthru
        _
      %p1508 = scmp.le.s32.totalorder 2, %s20
      // Predicated region
      $region99: #{tpu_custom_call.1} parent=5 // pred_check
        %p1509 = pneg %p1508
      $region100: #{tpu_custom_call.1} parent=5 // pred_check_branch
        %1511 = sbr.rel (%p1509) target = $region102
      $region101: #{tpu_custom_call.1} parent=5 // pred_region
        %s1512 = ssub.s32 %s20, 2
        // Predicated region
        $region103: #{tpu_custom_call.1} parent=101 // pred_check
          %p1513 = pneg %p243
        $region104: #{tpu_custom_call.1} parent=101 // pred_check_branch
          %1515 = sbr.rel (%p1513) target = $region106
        $region105: #{tpu_custom_call.1} parent=101 // pred_region
          %s1516 = sand.u32 %s228, 1
          %s1517 = scalar_lea.sflag [#allocation5], %s1516
          %s1518 = sand.u32 %s228, 1
          %s1519 = smul.addr %s1518, 128
          %s1520 = scalar_lea.vmem [#allocation6], %s1519
          %1521 = dma.done %s1517, 2048
        $region106: #{tpu_custom_call.1} parent=101 // pred_fallthru
          _
      $region102: #{tpu_custom_call.1} parent=5 // pred_fallthru
        _
    $region6: #{tpu_custom_call.1} parent=1 // loop_footer
      %s24 = sadd.s32 1, %s20
    $region7: #{tpu_custom_call.1} parent=1 // loop_footer_branch
      %19 = sbr.rel target = $region3
    $region8: #{tpu_custom_call.1} parent=1 // loop_exit
      _
    %1522 = vsyncpa [#allocation4], 1
    %s1523 = scalar_lea.sflag [#allocation4], 1
    %1524 = vsyncpa %s1523, 1
    %1525 = vsyncpa [#allocation5], 1
    %s1526 = scalar_lea.sflag [#allocation5], 1
    %1527 = vsyncpa %s1526, 1

</llo_original>
